<compile_context>
chip_gen: v7x
topology: tpu7x:2x2x1
jax: 0.10.0
libtpu: 0.0.40
codegen_flags: <defaults>
</compile_context>

<pallas_src>
import jax
import jax.numpy as jnp
from jax import lax
from jax.experimental import pallas as pl
from jax.experimental.pallas import tpu as pltpu


def seq_encoder_kernel(x_f_ref, x_b_ref, m_f_ref, m_b_ref,
                       wih_f_ref, wih_b_ref, gib_f_ref, gib_b_ref,
                       whh_bd_ref, bhn_f_ref, bhn_b_ref,
                       wfc_ref, bfc_ref,
                       out_f_ref, out_b_ref, hid_ref,
                       h_sc, gi_f_sc, gi_b_sc):
    i = pl.program_id(0)
    nc = pl.num_programs(0)
    Bp = h_sc.shape[0]
    CB = x_f_ref.shape[0]           # chunk_T * Bp
    chunk_T = CB // Bp
    H = bhn_f_ref.shape[1]

    @pl.when(i == 0)
    def _():
        h_sc[...] = jnp.zeros_like(h_sc)

    # ---- per-chunk input projections (MXU, bf16 operands, f32 accumulate) ----
    # gib_* already holds b_ih + b_hh[r,z] (folded in the wrapper).
    gi_f_sc[...] = (jnp.dot(x_f_ref[...], wih_f_ref[...],
                            preferred_element_type=jnp.float32) + gib_f_ref[...])
    gi_b_sc[...] = (jnp.dot(x_b_ref[...], wih_b_ref[...],
                            preferred_element_type=jnp.float32) + gib_b_ref[...])

    # loop-invariant loads
    whh_bd = whh_bd_ref[...]        # (2H, 6H) bf16, block_diag(whh_f, whh_b)
    bhn_f = bhn_f_ref[...]          # (1, H)
    bhn_b = bhn_b_ref[...]          # (1, H)

    def gates(gi, gh, bhn, h_prev):
        # PyTorch GRU gate order [r, z, n]; only b_hn stays inside the r-multiplied term.
        r = jax.nn.sigmoid(gi[:, 0:H] + gh[:, 0:H])
        z = jax.nn.sigmoid(gi[:, H:2 * H] + gh[:, H:2 * H])
        n = jnp.tanh(gi[:, 2 * H:3 * H] + r * (gh[:, 2 * H:3 * H] + bhn))
        return (1.0 - z) * n + z * h_prev

    def step(t, h_cat):
        off_f = pl.multiple_of(t * Bp, Bp)
        off_b = pl.multiple_of((chunk_T - 1 - t) * Bp, Bp)

        # one fused recurrent matmul for both directions: (Bp,2H) @ (2H,6H)
        gh = jnp.dot(h_cat.astype(jnp.bfloat16), whh_bd,
                     preferred_element_type=jnp.float32)        # (Bp, 6H)

        h_f = h_cat[:, 0:H]
        h_b = h_cat[:, H:2 * H]

        gi_f_t = gi_f_sc[pl.ds(off_f, Bp), :]                   # (Bp, 3H)
        gi_b_t = gi_b_sc[pl.ds(off_b, Bp), :]
        m_f = m_f_ref[pl.ds(off_f, Bp), :] > 0.0                # (Bp, 1)
        m_b = m_b_ref[pl.ds(off_b, Bp), :] > 0.0

        h_new_f = gates(gi_f_t, gh[:, 0:3 * H], bhn_f, h_f)
        h_new_b = gates(gi_b_t, gh[:, 3 * H:6 * H], bhn_b, h_b)

        # lane-dense full-width stores (pad_packed_sequence: padded steps are 0)
        out_f_ref[pl.ds(off_f, Bp), :] = jnp.where(m_f, h_new_f, 0.0)
        out_b_ref[pl.ds(off_b, Bp), :] = jnp.where(m_b, h_new_b, 0.0)

        h_f_next = jnp.where(m_f, h_new_f, h_f)
        h_b_next = jnp.where(m_b, h_new_b, h_b)
        return jnp.concatenate([h_f_next, h_b_next], axis=1)

    # h carried in vregs across the unrolled chunk loop; VMEM only at chunk edges.
    h_final = lax.fori_loop(0, chunk_T, step, h_sc[...], unroll=True)
    h_sc[...] = h_final

    # ---- final fc(cat(h_fwd, h_bwd)) + tanh on the last chunk ----
    @pl.when(i == nc - 1)
    def _():
        feats = (jnp.dot(h_final.astype(jnp.bfloat16), wfc_ref[...],
                         preferred_element_type=jnp.float32) + bfc_ref[...])
        hid_ref[...] = jnp.tanh(feats)


def seq_encoder(src, src_len, params, *, chunk_T=4):
    T, B = src.shape
    V, E = params["emb"].shape
    H = params["whh_f"].shape[0]
    D = params["wfc"].shape[1]

    # pad batch to 16 sublanes (bf16 MXU operands) and time to a chunk multiple;
    # padded rows/steps have length 0 -> always masked.
    Bp = ((B + 15) // 16) * 16
    Tp = ((T + chunk_T - 1) // chunk_T) * chunk_T
    nc = Tp // chunk_T
    CB = chunk_T * Bp

    src_p = jnp.pad(src.astype(jnp.int32), ((0, Tp - T), (0, Bp - B)))
    lens_p = jnp.pad(src_len.astype(jnp.int32), (0, Bp - B))            # (Bp,)

    # embedding gather in XLA (replaces the one-hot MXU matmul entirely)
    x = params["emb"][src_p]                                            # (Tp, Bp, E) f32
    x2 = x.reshape(Tp * Bp, E).astype(jnp.bfloat16)

    # length masks computed once: (Tp*Bp, 1) f32, 1.0 where t < len
    mask = (jnp.arange(Tp, dtype=jnp.int32)[:, None] < lens_p[None, :]).astype(jnp.float32)
    mask2 = mask.reshape(Tp * Bp, 1)

    # fold b_ih + b_hh[r,z]; keep b_hn separate (must stay inside r*(...))
    def fold_bias(bih, bhh):
        return bih + jnp.concatenate([bhh[:, :2 * H], jnp.zeros((1, H), jnp.float32)], axis=1)
    gib_f = fold_bias(params["bih_f"], params["bhh_f"])                 # (1, 3H) f32
    gib_b = fold_bias(params["bih_b"], params["bhh_b"])
    bhn_f = params["bhh_f"][:, 2 * H:]                                  # (1, H) f32
    bhn_b = params["bhh_b"][:, 2 * H:]

    # fused recurrent weight: block_diag(whh_f, whh_b) -> one (2H,6H) matmul per step
    zer = jnp.zeros((H, 3 * H), jnp.float32)
    whh_bd = jnp.concatenate(
        [jnp.concatenate([params["whh_f"], zer], axis=1),
         jnp.concatenate([zer, params["whh_b"]], axis=1)], axis=0)      # (2H, 6H)

    # bf16 MXU operands, f32 accumulate / gate math
    wih_f = params["wih_f"].astype(jnp.bfloat16)
    wih_b = params["wih_b"].astype(jnp.bfloat16)
    whh_bd = whh_bd.astype(jnp.bfloat16)
    wfc = params["wfc"].astype(jnp.bfloat16)
    bfc = params["bfc"]

    def full_spec(a):
        return pl.BlockSpec(a.shape, lambda i: (0,) * a.ndim)

    in_specs = [
        pl.BlockSpec((CB, E), lambda i: (i, 0)),                 # x, forward chunk view
        pl.BlockSpec((CB, E), lambda i: (nc - 1 - i, 0)),        # x, backward chunk view
        pl.BlockSpec((CB, 1), lambda i: (i, 0)),                 # mask, forward
        pl.BlockSpec((CB, 1), lambda i: (nc - 1 - i, 0)),        # mask, backward
        full_spec(wih_f), full_spec(wih_b), full_spec(gib_f), full_spec(gib_b),
        full_spec(whh_bd), full_spec(bhn_f), full_spec(bhn_b),
        full_spec(wfc), full_spec(bfc),
    ]
    out_specs = (
        pl.BlockSpec((CB, H), lambda i: (i, 0)),                 # forward outputs
        pl.BlockSpec((CB, H), lambda i: (nc - 1 - i, 0)),        # backward outputs
        pl.BlockSpec((Bp, D), lambda i: (0, 0)),                 # hidden (written on last chunk)
    )
    scratch_shapes = [
        pltpu.VMEM((Bp, 2 * H), jnp.float32),                    # h state [fwd | bwd], persists
        pltpu.VMEM((CB, 3 * H), jnp.float32),                    # gi forward chunk
        pltpu.VMEM((CB, 3 * H), jnp.float32),                    # gi backward chunk
    ]

    # size the scoped VMEM to the real (double-buffered) buffer total, with headroom
    vmem_bytes = (
        2 * 2 * CB * E * 2                 # x chunks (2 views, 2 buffers, bf16)
        + 2 * 2 * CB * 4                   # mask chunks
        + 2 * (E * 3 * H) * 2 + (2 * H * 6 * H) * 2 + (2 * H * D) * 2   # weights (bf16)
        + 4 * (2 * 3 * H + 2 * H + D)      # biases (f32)
        + 2 * CB * 3 * H * 4               # gi scratches
        + 2 * 2 * CB * H * 4               # output chunks (2 arrays, 2 buffers)
        + Bp * D * 4 + Bp * 2 * H * 4)     # hid block + h scratch
    vmem_limit = int(min(max(2 * vmem_bytes, 4 << 20), 64 << 20))

    cost = pl.CostEstimate(
        flops=int(2 * Tp * Bp * E * 3 * H * 2        # input projections (both dirs)
                  + 2 * Tp * Bp * 2 * H * 6 * H      # fused recurrent matmuls
                  + 2 * Bp * 2 * H * D),             # final fc
        transcendentals=int(2 * Tp * Bp * 3 * H + Bp * D),
        bytes_accessed=int(2 * 2 * Tp * Bp * E + 2 * 4 * Tp * Bp
                           + 2 * (E * 3 * H + H * 6 * H + H * D)
                           + 4 * (Tp * Bp * 2 * H + Bp * D)),
    )

    out_f, out_b, hid = pl.pallas_call(
        seq_encoder_kernel,
        out_shape=(
            jax.ShapeDtypeStruct((Tp * Bp, H), jnp.float32),
            jax.ShapeDtypeStruct((Tp * Bp, H), jnp.float32),
            jax.ShapeDtypeStruct((Bp, D), jnp.float32),
        ),
        grid_spec=pltpu.PrefetchScalarGridSpec(
            num_scalar_prefetch=0,
            grid=(nc,),
            in_specs=in_specs,
            out_specs=out_specs,
            scratch_shapes=scratch_shapes),
        compiler_params=pltpu.CompilerParams(
            dimension_semantics=("arbitrary",),
            vmem_limit_bytes=vmem_limit),
        cost_estimate=cost,
    )(x2, x2, mask2, mask2,
      wih_f, wih_b, gib_f, gib_b, whh_bd, bhn_f, bhn_b, wfc, bfc)

    out_f3 = out_f.reshape(Tp, Bp, H)
    out_b3 = out_b.reshape(Tp, Bp, H)
    outputs = jnp.concatenate([out_f3, out_b3], axis=-1)[:T, :B, :]
    return outputs, hid[:B]


def init_params(key, input_dim, emb_dim, enc_hid_dim, dec_hid_dim):
    ks = jax.random.split(key, 11)
    kh = 1.0 / jnp.sqrt(enc_hid_dim)
    kf = 1.0 / jnp.sqrt(2 * enc_hid_dim)

    def u(k, shape, s):
        return jax.random.uniform(k, shape, jnp.float32, -s, s)

    return dict(
        emb=jax.random.normal(ks[0], (input_dim, emb_dim), jnp.float32),
        wih_f=u(ks[1], (emb_dim, 3 * enc_hid_dim), kh),
        whh_f=u(ks[2], (enc_hid_dim, 3 * enc_hid_dim), kh),
        bih_f=u(ks[3], (1, 3 * enc_hid_dim), kh),
        bhh_f=u(ks[4], (1, 3 * enc_hid_dim), kh),
        wih_b=u(ks[5], (emb_dim, 3 * enc_hid_dim), kh),
        whh_b=u(ks[6], (enc_hid_dim, 3 * enc_hid_dim), kh),
        bih_b=u(ks[7], (1, 3 * enc_hid_dim), kh),
        bhh_b=u(ks[8], (1, 3 * enc_hid_dim), kh),
        wfc=u(ks[9], (2 * enc_hid_dim, dec_hid_dim), kf),
        bfc=u(ks[10], (1, dec_hid_dim), kf),
    )


def seq_encoder_ref(src, src_len, p):
    # pure-JAX reference reproducing packed-sequence bi-GRU semantics
    T, B = src.shape
    H = p["whh_f"].shape[0]
    emb = p["emb"][src]  # (T, B, E)

    def cell(x, h, wih, whh, bih, bhh):
        gi = x @ wih + bih
        gh = h @ whh + bhh
        r = jax.nn.sigmoid(gi[:, :H] + gh[:, :H])
        z = jax.nn.sigmoid(gi[:, H:2 * H] + gh[:, H:2 * H])
        n = jnp.tanh(gi[:, 2 * H:] + r * gh[:, 2 * H:])
        return (1 - z) * n + z * h

    def run(ts, wih, whh, bih, bhh):
        h = jnp.zeros((B, H), jnp.float32)
        outs = {}
        for t in ts:
            hn = cell(emb[t], h, wih, whh, bih, bhh)
            m = (src_len > t).astype(jnp.float32)[:, None]
            h = m * hn + (1 - m) * h
            outs[t] = m * hn
        return h, outs

    h_f, of = run(range(T), p["wih_f"], p["whh_f"], p["bih_f"], p["bhh_f"])
    h_b, ob = run(range(T - 1, -1, -1), p["wih_b"], p["whh_b"], p["bih_b"], p["bhh_b"])
    outputs = jnp.stack([jnp.concatenate([of[t], ob[t]], axis=-1) for t in range(T)])
    feats = jnp.concatenate([h_f, h_b], axis=1) @ p["wfc"] + p["bfc"]
    return outputs, jnp.tanh(feats)


if __name__ == "__main__":
    INPUT_DIM, EMB_DIM, ENC_HID, DEC_HID = 12, 8, 16, 32
    T, B = 8, 4

    key = jax.random.PRNGKey(0)
    kp, ks = jax.random.split(key)
    params = init_params(kp, INPUT_DIM, EMB_DIM, ENC_HID, DEC_HID)

    src = jax.random.randint(ks, (T, B), 0, INPUT_DIM, dtype=jnp.int32)
    # pack_padded_sequence(enforce_sorted=True): lengths sorted descending, max == T
    src_len = jnp.array([8, 6, 5, 3], dtype=jnp.int32)

    outputs, hidden = jax.jit(seq_encoder)(src, src_len, params)
    jax.block_until_ready((outputs, hidden))

    ref_out, ref_hid = seq_encoder_ref(src, src_len, params)
    assert outputs.shape == (T, B, 2 * ENC_HID)
    assert hidden.shape == (B, DEC_HID)
    # bf16 MXU operands (f32 accumulate) -> slightly looser tolerance than pure f32
    assert jnp.allclose(outputs, ref_out, atol=2e-2, rtol=2e-2)
    assert jnp.allclose(hidden, ref_hid, atol=2e-2, rtol=2e-2)

    print("KERNEL_OK")
</pallas_src>

<mosaic_0001>
module attributes {stable_mosaic.version = 11 : i64} {
  func.func @seq_encoder_kernel(%arg0: i32, %arg1: memref<64x8xbf16, #tpu.memory_space<vmem>>, %arg2: memref<64x8xbf16, #tpu.memory_space<vmem>>, %arg3: memref<64x1xf32, #tpu.memory_space<vmem>>, %arg4: memref<64x1xf32, #tpu.memory_space<vmem>>, %arg5: memref<8x48xbf16, #tpu.memory_space<vmem>>, %arg6: memref<8x48xbf16, #tpu.memory_space<vmem>>, %arg7: memref<1x48xf32, #tpu.memory_space<vmem>>, %arg8: memref<1x48xf32, #tpu.memory_space<vmem>>, %arg9: memref<32x96xbf16, #tpu.memory_space<vmem>>, %arg10: memref<1x16xf32, #tpu.memory_space<vmem>>, %arg11: memref<1x16xf32, #tpu.memory_space<vmem>>, %arg12: memref<32x32xbf16, #tpu.memory_space<vmem>>, %arg13: memref<1x32xf32, #tpu.memory_space<vmem>>, %arg14: memref<64x16xf32, #tpu.memory_space<vmem>>, %arg15: memref<64x16xf32, #tpu.memory_space<vmem>>, %arg16: memref<16x32xf32, #tpu.memory_space<vmem>>, %arg17: memref<16x32xf32, #tpu.memory_space<vmem>>, %arg18: memref<64x48xf32, #tpu.memory_space<vmem>>, %arg19: memref<64x48xf32, #tpu.memory_space<vmem>>) attributes {dimension_semantics = [#tpu.dimension_semantics<arbitrary>], iteration_bounds = array<i64: 2>, scalar_prefetch = 0 : i64, scratch_operands = 3 : i64, tpu.core_type = #tpu.core_type<tc>, window_params = [{transform_indices = @transform_0, window_bounds = array<i64: 64, 8>}, {transform_indices = @transform_1, window_bounds = array<i64: 64, 8>}, {transform_indices = @transform_2, window_bounds = array<i64: 64, 1>}, {transform_indices = @transform_3, window_bounds = array<i64: 64, 1>}, {pipeline_mode = #tpu.pipeline_mode<synchronous>, transform_indices = @transform_4, window_bounds = array<i64: 8, 48>}, {pipeline_mode = #tpu.pipeline_mode<synchronous>, transform_indices = @transform_5, window_bounds = array<i64: 8, 48>}, {pipeline_mode = #tpu.pipeline_mode<synchronous>, transform_indices = @transform_6, window_bounds = array<i64: 1, 48>}, {pipeline_mode = #tpu.pipeline_mode<synchronous>, transform_indices = @transform_7, window_bounds = array<i64: 1, 48>}, {pipeline_mode = #tpu.pipeline_mode<synchronous>, transform_indices = @transform_8, window_bounds = array<i64: 32, 96>}, {pipeline_mode = #tpu.pipeline_mode<synchronous>, transform_indices = @transform_9, window_bounds = array<i64: 1, 16>}, {pipeline_mode = #tpu.pipeline_mode<synchronous>, transform_indices = @transform_10, window_bounds = array<i64: 1, 16>}, {pipeline_mode = #tpu.pipeline_mode<synchronous>, transform_indices = @transform_11, window_bounds = array<i64: 32, 32>}, {pipeline_mode = #tpu.pipeline_mode<synchronous>, transform_indices = @transform_12, window_bounds = array<i64: 1, 32>}, {transform_indices = @transform_13, window_bounds = array<i64: 64, 16>}, {transform_indices = @transform_14, window_bounds = array<i64: 64, 16>}, {pipeline_mode = #tpu.pipeline_mode<synchronous>, transform_indices = @transform_15, window_bounds = array<i64: 16, 32>}]} {
    %c0_i32 = arith.constant 0 : i32
    %0 = arith.cmpi eq, %arg0, %c0_i32 : i32
    %1 = arith.extui %0 : i1 to i32
    %c0_i32_0 = arith.constant 0 : i32
    %2 = arith.cmpi ne, %1, %c0_i32_0 : i32
    scf.if %2 {
      %cst_109 = arith.constant 0.000000e+00 : f32
      %417 = vector.broadcast %cst_109 : f32 to vector<16x32xf32>
      %c0_110 = arith.constant 0 : index
      %c0_111 = arith.constant 0 : index
      %418 = vector.load %arg17[%c0_110, %c0_111] : memref<16x32xf32, #tpu.memory_space<vmem>>, vector<16x32xf32>
      tpu.vector_store %arg17[%c0_110, %c0_111], %417 {strides = array<i32>} : memref<16x32xf32, #tpu.memory_space<vmem>>, vector<16x32xf32>,
    } else {
    }
    %c0 = arith.constant 0 : index
    %c0_1 = arith.constant 0 : index
    %3 = vector.load %arg1[%c0, %c0_1] : memref<64x8xbf16, #tpu.memory_space<vmem>>, vector<64x8xbf16>
    %c0_2 = arith.constant 0 : index
    %c0_3 = arith.constant 0 : index
    %4 = vector.load %arg5[%c0_2, %c0_3] : memref<8x48xbf16, #tpu.memory_space<vmem>>, vector<8x48xbf16>
    %cst = arith.constant dense<0.000000e+00> : vector<64x48xf32>
    %5 = tpu.matmul %3, %4, %cst {dimension_numbers = #tpu.dot_dimension_numbers<[1], [0], [0], [1], [0, 0, 1, 1], [], []>} : vector<64x8xbf16>, vector<8x48xbf16>, vector<64x48xf32> -> vector<64x48xf32>
    %c0_4 = arith.constant 0 : index
    %c0_5 = arith.constant 0 : index
    %6 = vector.load %arg7[%c0_4, %c0_5] : memref<1x48xf32, #tpu.memory_space<vmem>>, vector<1x48xf32>
    %7 = vector.broadcast %6 : vector<1x48xf32> to vector<64x48xf32>
    %8 = arith.addf %5, %7 : vector<64x48xf32>
    %c0_6 = arith.constant 0 : index
    %c0_7 = arith.constant 0 : index
    %9 = vector.load %arg18[%c0_6, %c0_7] : memref<64x48xf32, #tpu.memory_space<vmem>>, vector<64x48xf32>
    tpu.vector_store %arg18[%c0_6, %c0_7], %8 {strides = array<i32>} : memref<64x48xf32, #tpu.memory_space<vmem>>, vector<64x48xf32>,
    %c0_8 = arith.constant 0 : index
    %c0_9 = arith.constant 0 : index
    %10 = vector.load %arg2[%c0_8, %c0_9] : memref<64x8xbf16, #tpu.memory_space<vmem>>, vector<64x8xbf16>
    %c0_10 = arith.constant 0 : index
    %c0_11 = arith.constant 0 : index
    %11 = vector.load %arg6[%c0_10, %c0_11] : memref<8x48xbf16, #tpu.memory_space<vmem>>, vector<8x48xbf16>
    %cst_12 = arith.constant dense<0.000000e+00> : vector<64x48xf32>
    %12 = tpu.matmul %10, %11, %cst_12 {dimension_numbers = #tpu.dot_dimension_numbers<[1], [0], [0], [1], [0, 0, 1, 1], [], []>} : vector<64x8xbf16>, vector<8x48xbf16>, vector<64x48xf32> -> vector<64x48xf32>
    %c0_13 = arith.constant 0 : index
    %c0_14 = arith.constant 0 : index
    %13 = vector.load %arg8[%c0_13, %c0_14] : memref<1x48xf32, #tpu.memory_space<vmem>>, vector<1x48xf32>
    %14 = vector.broadcast %13 : vector<1x48xf32> to vector<64x48xf32>
    %15 = arith.addf %12, %14 : vector<64x48xf32>
    %c0_15 = arith.constant 0 : index
    %c0_16 = arith.constant 0 : index
    %16 = vector.load %arg19[%c0_15, %c0_16] : memref<64x48xf32, #tpu.memory_space<vmem>>, vector<64x48xf32>
    tpu.vector_store %arg19[%c0_15, %c0_16], %15 {strides = array<i32>} : memref<64x48xf32, #tpu.memory_space<vmem>>, vector<64x48xf32>,
    %c0_17 = arith.constant 0 : index
    %c0_18 = arith.constant 0 : index
    %17 = vector.load %arg9[%c0_17, %c0_18] : memref<32x96xbf16, #tpu.memory_space<vmem>>, vector<32x96xbf16>
    %c0_19 = arith.constant 0 : index
    %c0_20 = arith.constant 0 : index
    %18 = vector.load %arg10[%c0_19, %c0_20] : memref<1x16xf32, #tpu.memory_space<vmem>>, vector<1x16xf32>
    %c0_21 = arith.constant 0 : index
    %c0_22 = arith.constant 0 : index
    %19 = vector.load %arg11[%c0_21, %c0_22] : memref<1x16xf32, #tpu.memory_space<vmem>>, vector<1x16xf32>
    %c0_23 = arith.constant 0 : index
    %c0_24 = arith.constant 0 : index
    %20 = vector.load %arg17[%c0_23, %c0_24] : memref<16x32xf32, #tpu.memory_space<vmem>>, vector<16x32xf32>
    %c0_i32_25 = arith.constant 0 : i32
    %c16_i32 = arith.constant 16 : i32
    %21 = arith.muli %c0_i32_25, %c16_i32 : i32
    %22 = tpu.assume_multiple %21, 16 : i32
    %c3_i32 = arith.constant 3 : i32
    %23 = arith.subi %c3_i32, %c0_i32_25 : i32
    %c16_i32_26 = arith.constant 16 : i32
    %24 = arith.muli %23, %c16_i32_26 : i32
    %25 = tpu.assume_multiple %24, 16 : i32
    %26 = arith.truncf %20 : vector<16x32xf32> to vector<16x32xbf16>
    %cst_27 = arith.constant dense<0.000000e+00> : vector<16x96xf32>
    %27 = tpu.matmul %26, %17, %cst_27 {dimension_numbers = #tpu.dot_dimension_numbers<[1], [0], [0], [1], [0, 0, 1, 1], [], []>} : vector<16x32xbf16>, vector<32x96xbf16>, vector<16x96xf32> -> vector<16x96xf32>
    %28 = vector.extract_strided_slice %20 {offsets = [0, 0], sizes = [16, 16], strides = [1, 1]} : vector<16x32xf32> to vector<16x16xf32>
    %29 = vector.extract_strided_slice %20 {offsets = [0, 16], sizes = [16, 16], strides = [1, 1]} : vector<16x32xf32> to vector<16x16xf32>
    %30 = arith.index_cast %22 : i32 to index
    %c0_28 = arith.constant 0 : index
    %31 = vector.load %arg18[%30, %c0_28] : memref<64x48xf32, #tpu.memory_space<vmem>>, vector<16x48xf32>
    %32 = arith.index_cast %25 : i32 to index
    %c0_29 = arith.constant 0 : index
    %33 = vector.load %arg19[%32, %c0_29] : memref<64x48xf32, #tpu.memory_space<vmem>>, vector<16x48xf32>
    %34 = arith.index_cast %22 : i32 to index
    %c0_30 = arith.constant 0 : index
    %35 = vector.load %arg3[%34, %c0_30] : memref<64x1xf32, #tpu.memory_space<vmem>>, vector<16x1xf32>
    %cst_31 = arith.constant 0.000000e+00 : f32
    %36 = vector.broadcast %cst_31 : f32 to vector<16x1xf32>
    %37 = arith.cmpf ogt, %35, %36 : vector<16x1xf32>
    %38 = arith.index_cast %25 : i32 to index
    %c0_32 = arith.constant 0 : index
    %39 = vector.load %arg4[%38, %c0_32] : memref<64x1xf32, #tpu.memory_space<vmem>>, vector<16x1xf32>
    %cst_33 = arith.constant 0.000000e+00 : f32
    %40 = vector.broadcast %cst_33 : f32 to vector<16x1xf32>
    %41 = arith.cmpf ogt, %39, %40 : vector<16x1xf32>
    %42 = vector.extract_strided_slice %27 {offsets = [0, 0], sizes = [16, 48], strides = [1, 1]} : vector<16x96xf32> to vector<16x48xf32>
    %43 = vector.extract_strided_slice %31 {offsets = [0, 0], sizes = [16, 16], strides = [1, 1]} : vector<16x48xf32> to vector<16x16xf32>
    %44 = vector.extract_strided_slice %42 {offsets = [0, 0], sizes = [16, 16], strides = [1, 1]} : vector<16x48xf32> to vector<16x16xf32>
    %45 = arith.addf %43, %44 : vector<16x16xf32>
    %46 = arith.negf %45 : vector<16x16xf32>
    %47 = math.exp %46 : vector<16x16xf32>
    %cst_34 = arith.constant 1.000000e+00 : f32
    %48 = vector.broadcast %cst_34 : f32 to vector<16x16xf32>
    %49 = arith.addf %48, %47 : vector<16x16xf32>
    %50 = arith.divf %48, %49 : vector<16x16xf32>
    %51 = vector.extract_strided_slice %31 {offsets = [0, 16], sizes = [16, 16], strides = [1, 1]} : vector<16x48xf32> to vector<16x16xf32>
    %52 = vector.extract_strided_slice %42 {offsets = [0, 16], sizes = [16, 16], strides = [1, 1]} : vector<16x48xf32> to vector<16x16xf32>
    %53 = arith.addf %51, %52 : vector<16x16xf32>
    %54 = arith.negf %53 : vector<16x16xf32>
    %55 = math.exp %54 : vector<16x16xf32>
    %cst_35 = arith.constant 1.000000e+00 : f32
    %56 = vector.broadcast %cst_35 : f32 to vector<16x16xf32>
    %57 = arith.addf %56, %55 : vector<16x16xf32>
    %58 = arith.divf %56, %57 : vector<16x16xf32>
    %59 = vector.extract_strided_slice %31 {offsets = [0, 32], sizes = [16, 16], strides = [1, 1]} : vector<16x48xf32> to vector<16x16xf32>
    %60 = vector.extract_strided_slice %42 {offsets = [0, 32], sizes = [16, 16], strides = [1, 1]} : vector<16x48xf32> to vector<16x16xf32>
    %61 = vector.broadcast %18 : vector<1x16xf32> to vector<16x16xf32>
    %62 = arith.addf %60, %61 : vector<16x16xf32>
    %63 = arith.mulf %50, %62 : vector<16x16xf32>
    %64 = arith.addf %59, %63 : vector<16x16xf32>
    %65 = math.tanh %64 : vector<16x16xf32>
    %cst_36 = arith.constant 1.000000e+00 : f32
    %66 = vector.broadcast %cst_36 : f32 to vector<16x16xf32>
    %67 = arith.subf %66, %58 : vector<16x16xf32>
    %68 = arith.mulf %67, %65 : vector<16x16xf32>
    %69 = arith.mulf %58, %28 : vector<16x16xf32>
    %70 = arith.addf %68, %69 : vector<16x16xf32>
    %71 = vector.extract_strided_slice %27 {offsets = [0, 48], sizes = [16, 48], strides = [1, 1]} : vector<16x96xf32> to vector<16x48xf32>
    %72 = vector.extract_strided_slice %33 {offsets = [0, 0], sizes = [16, 16], strides = [1, 1]} : vector<16x48xf32> to vector<16x16xf32>
    %73 = vector.extract_strided_slice %71 {offsets = [0, 0], sizes = [16, 16], strides = [1, 1]} : vector<16x48xf32> to vector<16x16xf32>
    %74 = arith.addf %72, %73 : vector<16x16xf32>
    %75 = arith.negf %74 : vector<16x16xf32>
    %76 = math.exp %75 : vector<16x16xf32>
    %cst_37 = arith.constant 1.000000e+00 : f32
    %77 = vector.broadcast %cst_37 : f32 to vector<16x16xf32>
    %78 = arith.addf %77, %76 : vector<16x16xf32>
    %79 = arith.divf %77, %78 : vector<16x16xf32>
    %80 = vector.extract_strided_slice %33 {offsets = [0, 16], sizes = [16, 16], strides = [1, 1]} : vector<16x48xf32> to vector<16x16xf32>
    %81 = vector.extract_strided_slice %71 {offsets = [0, 16], sizes = [16, 16], strides = [1, 1]} : vector<16x48xf32> to vector<16x16xf32>
    %82 = arith.addf %80, %81 : vector<16x16xf32>
    %83 = arith.negf %82 : vector<16x16xf32>
    %84 = math.exp %83 : vector<16x16xf32>
    %cst_38 = arith.constant 1.000000e+00 : f32
    %85 = vector.broadcast %cst_38 : f32 to vector<16x16xf32>
    %86 = arith.addf %85, %84 : vector<16x16xf32>
    %87 = arith.divf %85, %86 : vector<16x16xf32>
    %88 = vector.extract_strided_slice %33 {offsets = [0, 32], sizes = [16, 16], strides = [1, 1]} : vector<16x48xf32> to vector<16x16xf32>
    %89 = vector.extract_strided_slice %71 {offsets = [0, 32], sizes = [16, 16], strides = [1, 1]} : vector<16x48xf32> to vector<16x16xf32>
    %90 = vector.broadcast %19 : vector<1x16xf32> to vector<16x16xf32>
    %91 = arith.addf %89, %90 : vector<16x16xf32>
    %92 = arith.mulf %79, %91 : vector<16x16xf32>
    %93 = arith.addf %88, %92 : vector<16x16xf32>
    %94 = math.tanh %93 : vector<16x16xf32>
    %cst_39 = arith.constant 1.000000e+00 : f32
    %95 = vector.broadcast %cst_39 : f32 to vector<16x16xf32>
    %96 = arith.subf %95, %87 : vector<16x16xf32>
    %97 = arith.mulf %96, %94 : vector<16x16xf32>
    %98 = arith.mulf %87, %29 : vector<16x16xf32>
    %99 = arith.addf %97, %98 : vector<16x16xf32>
    %cst_40 = arith.constant 0.000000e+00 : f32
    %100 = vector.shape_cast %37 : vector<16x1xi1> to vector<16x1xi1>
    %101 = vector.broadcast %100 : vector<16x1xi1> to vector<16x16xi1>
    %102 = vector.broadcast %cst_40 : f32 to vector<16x16xf32>
    %103 = arith.select %101, %70, %102 : vector<16x16xi1>, vector<16x16xf32>
    %104 = arith.index_cast %22 : i32 to index
    %c0_41 = arith.constant 0 : index
    %105 = vector.load %arg14[%104, %c0_41] : memref<64x16xf32, #tpu.memory_space<vmem>>, vector<16x16xf32>
    tpu.vector_store %arg14[%104, %c0_41], %103 {strides = array<i32>} : memref<64x16xf32, #tpu.memory_space<vmem>>, vector<16x16xf32>,
    %cst_42 = arith.constant 0.000000e+00 : f32
    %106 = vector.shape_cast %41 : vector<16x1xi1> to vector<16x1xi1>
    %107 = vector.broadcast %106 : vector<16x1xi1> to vector<16x16xi1>
    %108 = vector.broadcast %cst_42 : f32 to vector<16x16xf32>
    %109 = arith.select %107, %99, %108 : vector<16x16xi1>, vector<16x16xf32>
    %110 = arith.index_cast %25 : i32 to index
    %c0_43 = arith.constant 0 : index
    %111 = vector.load %arg15[%110, %c0_43] : memref<64x16xf32, #tpu.memory_space<vmem>>, vector<16x16xf32>
    tpu.vector_store %arg15[%110, %c0_43], %109 {strides = array<i32>} : memref<64x16xf32, #tpu.memory_space<vmem>>, vector<16x16xf32>,
    %112 = vector.shape_cast %37 : vector<16x1xi1> to vector<16x1xi1>
    %113 = vector.broadcast %112 : vector<16x1xi1> to vector<16x16xi1>
    %114 = arith.select %113, %70, %28 : vector<16x16xi1>, vector<16x16xf32>
    %115 = vector.shape_cast %41 : vector<16x1xi1> to vector<16x1xi1>
    %116 = vector.broadcast %115 : vector<16x1xi1> to vector<16x16xi1>
    %117 = arith.select %116, %99, %29 : vector<16x16xi1>, vector<16x16xf32>
    %118 = tpu.concatenate %114, %117 in 1 : vector<16x16xf32>, vector<16x16xf32> -> vector<16x32xf32>
    %c1_i32 = arith.constant 1 : i32
    %c16_i32_44 = arith.constant 16 : i32
    %119 = arith.muli %c1_i32, %c16_i32_44 : i32
    %120 = tpu.assume_multiple %119, 16 : i32
    %c3_i32_45 = arith.constant 3 : i32
    %121 = arith.subi %c3_i32_45, %c1_i32 : i32
    %c16_i32_46 = arith.constant 16 : i32
    %122 = arith.muli %121, %c16_i32_46 : i32
    %123 = tpu.assume_multiple %122, 16 : i32
    %124 = arith.truncf %118 : vector<16x32xf32> to vector<16x32xbf16>
    %cst_47 = arith.constant dense<0.000000e+00> : vector<16x96xf32>
    %125 = tpu.matmul %124, %17, %cst_47 {dimension_numbers = #tpu.dot_dimension_numbers<[1], [0], [0], [1], [0, 0, 1, 1], [], []>} : vector<16x32xbf16>, vector<32x96xbf16>, vector<16x96xf32> -> vector<16x96xf32>
    %126 = vector.extract_strided_slice %118 {offsets = [0, 0], sizes = [16, 16], strides = [1, 1]} : vector<16x32xf32> to vector<16x16xf32>
    %127 = vector.extract_strided_slice %118 {offsets = [0, 16], sizes = [16, 16], strides = [1, 1]} : vector<16x32xf32> to vector<16x16xf32>
    %128 = arith.index_cast %120 : i32 to index
    %c0_48 = arith.constant 0 : index
    %129 = vector.load %arg18[%128, %c0_48] : memref<64x48xf32, #tpu.memory_space<vmem>>, vector<16x48xf32>
    %130 = arith.index_cast %123 : i32 to index
    %c0_49 = arith.constant 0 : index
    %131 = vector.load %arg19[%130, %c0_49] : memref<64x48xf32, #tpu.memory_space<vmem>>, vector<16x48xf32>
    %132 = arith.index_cast %120 : i32 to index
    %c0_50 = arith.constant 0 : index
    %133 = vector.load %arg3[%132, %c0_50] : memref<64x1xf32, #tpu.memory_space<vmem>>, vector<16x1xf32>
    %cst_51 = arith.constant 0.000000e+00 : f32
    %134 = vector.broadcast %cst_51 : f32 to vector<16x1xf32>
    %135 = arith.cmpf ogt, %133, %134 : vector<16x1xf32>
    %136 = arith.index_cast %123 : i32 to index
    %c0_52 = arith.constant 0 : index
    %137 = vector.load %arg4[%136, %c0_52] : memref<64x1xf32, #tpu.memory_space<vmem>>, vector<16x1xf32>
    %cst_53 = arith.constant 0.000000e+00 : f32
    %138 = vector.broadcast %cst_53 : f32 to vector<16x1xf32>
    %139 = arith.cmpf ogt, %137, %138 : vector<16x1xf32>
    %140 = vector.extract_strided_slice %125 {offsets = [0, 0], sizes = [16, 48], strides = [1, 1]} : vector<16x96xf32> to vector<16x48xf32>
    %141 = vector.extract_strided_slice %129 {offsets = [0, 0], sizes = [16, 16], strides = [1, 1]} : vector<16x48xf32> to vector<16x16xf32>
    %142 = vector.extract_strided_slice %140 {offsets = [0, 0], sizes = [16, 16], strides = [1, 1]} : vector<16x48xf32> to vector<16x16xf32>
    %143 = arith.addf %141, %142 : vector<16x16xf32>
    %144 = arith.negf %143 : vector<16x16xf32>
    %145 = math.exp %144 : vector<16x16xf32>
    %cst_54 = arith.constant 1.000000e+00 : f32
    %146 = vector.broadcast %cst_54 : f32 to vector<16x16xf32>
    %147 = arith.addf %146, %145 : vector<16x16xf32>
    %148 = arith.divf %146, %147 : vector<16x16xf32>
    %149 = vector.extract_strided_slice %129 {offsets = [0, 16], sizes = [16, 16], strides = [1, 1]} : vector<16x48xf32> to vector<16x16xf32>
    %150 = vector.extract_strided_slice %140 {offsets = [0, 16], sizes = [16, 16], strides = [1, 1]} : vector<16x48xf32> to vector<16x16xf32>
    %151 = arith.addf %149, %150 : vector<16x16xf32>
    %152 = arith.negf %151 : vector<16x16xf32>
    %153 = math.exp %152 : vector<16x16xf32>
    %cst_55 = arith.constant 1.000000e+00 : f32
    %154 = vector.broadcast %cst_55 : f32 to vector<16x16xf32>
    %155 = arith.addf %154, %153 : vector<16x16xf32>
    %156 = arith.divf %154, %155 : vector<16x16xf32>
    %157 = vector.extract_strided_slice %129 {offsets = [0, 32], sizes = [16, 16], strides = [1, 1]} : vector<16x48xf32> to vector<16x16xf32>
    %158 = vector.extract_strided_slice %140 {offsets = [0, 32], sizes = [16, 16], strides = [1, 1]} : vector<16x48xf32> to vector<16x16xf32>
    %159 = vector.broadcast %18 : vector<1x16xf32> to vector<16x16xf32>
    %160 = arith.addf %158, %159 : vector<16x16xf32>
    %161 = arith.mulf %148, %160 : vector<16x16xf32>
    %162 = arith.addf %157, %161 : vector<16x16xf32>
    %163 = math.tanh %162 : vector<16x16xf32>
    %cst_56 = arith.constant 1.000000e+00 : f32
    %164 = vector.broadcast %cst_56 : f32 to vector<16x16xf32>
    %165 = arith.subf %164, %156 : vector<16x16xf32>
    %166 = arith.mulf %165, %163 : vector<16x16xf32>
    %167 = arith.mulf %156, %126 : vector<16x16xf32>
    %168 = arith.addf %166, %167 : vector<16x16xf32>
    %169 = vector.extract_strided_slice %125 {offsets = [0, 48], sizes = [16, 48], strides = [1, 1]} : vector<16x96xf32> to vector<16x48xf32>
    %170 = vector.extract_strided_slice %131 {offsets = [0, 0], sizes = [16, 16], strides = [1, 1]} : vector<16x48xf32> to vector<16x16xf32>
    %171 = vector.extract_strided_slice %169 {offsets = [0, 0], sizes = [16, 16], strides = [1, 1]} : vector<16x48xf32> to vector<16x16xf32>
    %172 = arith.addf %170, %171 : vector<16x16xf32>
    %173 = arith.negf %172 : vector<16x16xf32>
    %174 = math.exp %173 : vector<16x16xf32>
    %cst_57 = arith.constant 1.000000e+00 : f32
    %175 = vector.broadcast %cst_57 : f32 to vector<16x16xf32>
    %176 = arith.addf %175, %174 : vector<16x16xf32>
    %177 = arith.divf %175, %176 : vector<16x16xf32>
    %178 = vector.extract_strided_slice %131 {offsets = [0, 16], sizes = [16, 16], strides = [1, 1]} : vector<16x48xf32> to vector<16x16xf32>
    %179 = vector.extract_strided_slice %169 {offsets = [0, 16], sizes = [16, 16], strides = [1, 1]} : vector<16x48xf32> to vector<16x16xf32>
    %180 = arith.addf %178, %179 : vector<16x16xf32>
    %181 = arith.negf %180 : vector<16x16xf32>
    %182 = math.exp %181 : vector<16x16xf32>
    %cst_58 = arith.constant 1.000000e+00 : f32
    %183 = vector.broadcast %cst_58 : f32 to vector<16x16xf32>
    %184 = arith.addf %183, %182 : vector<16x16xf32>
    %185 = arith.divf %183, %184 : vector<16x16xf32>
    %186 = vector.extract_strided_slice %131 {offsets = [0, 32], sizes = [16, 16], strides = [1, 1]} : vector<16x48xf32> to vector<16x16xf32>
    %187 = vector.extract_strided_slice %169 {offsets = [0, 32], sizes = [16, 16], strides = [1, 1]} : vector<16x48xf32> to vector<16x16xf32>
    %188 = vector.broadcast %19 : vector<1x16xf32> to vector<16x16xf32>
    %189 = arith.addf %187, %188 : vector<16x16xf32>
    %190 = arith.mulf %177, %189 : vector<16x16xf32>
    %191 = arith.addf %186, %190 : vector<16x16xf32>
    %192 = math.tanh %191 : vector<16x16xf32>
    %cst_59 = arith.constant 1.000000e+00 : f32
    %193 = vector.broadcast %cst_59 : f32 to vector<16x16xf32>
    %194 = arith.subf %193, %185 : vector<16x16xf32>
    %195 = arith.mulf %194, %192 : vector<16x16xf32>
    %196 = arith.mulf %185, %127 : vector<16x16xf32>
    %197 = arith.addf %195, %196 : vector<16x16xf32>
    %cst_60 = arith.constant 0.000000e+00 : f32
    %198 = vector.shape_cast %135 : vector<16x1xi1> to vector<16x1xi1>
    %199 = vector.broadcast %198 : vector<16x1xi1> to vector<16x16xi1>
    %200 = vector.broadcast %cst_60 : f32 to vector<16x16xf32>
    %201 = arith.select %199, %168, %200 : vector<16x16xi1>, vector<16x16xf32>
    %202 = arith.index_cast %120 : i32 to index
    %c0_61 = arith.constant 0 : index
    %203 = vector.load %arg14[%202, %c0_61] : memref<64x16xf32, #tpu.memory_space<vmem>>, vector<16x16xf32>
    tpu.vector_store %arg14[%202, %c0_61], %201 {strides = array<i32>} : memref<64x16xf32, #tpu.memory_space<vmem>>, vector<16x16xf32>,
    %cst_62 = arith.constant 0.000000e+00 : f32
    %204 = vector.shape_cast %139 : vector<16x1xi1> to vector<16x1xi1>
    %205 = vector.broadcast %204 : vector<16x1xi1> to vector<16x16xi1>
    %206 = vector.broadcast %cst_62 : f32 to vector<16x16xf32>
    %207 = arith.select %205, %197, %206 : vector<16x16xi1>, vector<16x16xf32>
    %208 = arith.index_cast %123 : i32 to index
    %c0_63 = arith.constant 0 : index
    %209 = vector.load %arg15[%208, %c0_63] : memref<64x16xf32, #tpu.memory_space<vmem>>, vector<16x16xf32>
    tpu.vector_store %arg15[%208, %c0_63], %207 {strides = array<i32>} : memref<64x16xf32, #tpu.memory_space<vmem>>, vector<16x16xf32>,
    %210 = vector.shape_cast %135 : vector<16x1xi1> to vector<16x1xi1>
    %211 = vector.broadcast %210 : vector<16x1xi1> to vector<16x16xi1>
    %212 = arith.select %211, %168, %126 : vector<16x16xi1>, vector<16x16xf32>
    %213 = vector.shape_cast %139 : vector<16x1xi1> to vector<16x1xi1>
    %214 = vector.broadcast %213 : vector<16x1xi1> to vector<16x16xi1>
    %215 = arith.select %214, %197, %127 : vector<16x16xi1>, vector<16x16xf32>
    %216 = tpu.concatenate %212, %215 in 1 : vector<16x16xf32>, vector<16x16xf32> -> vector<16x32xf32>
    %c2_i32 = arith.constant 2 : i32
    %c16_i32_64 = arith.constant 16 : i32
    %217 = arith.muli %c2_i32, %c16_i32_64 : i32
    %218 = tpu.assume_multiple %217, 16 : i32
    %c3_i32_65 = arith.constant 3 : i32
    %219 = arith.subi %c3_i32_65, %c2_i32 : i32
    %c16_i32_66 = arith.constant 16 : i32
    %220 = arith.muli %219, %c16_i32_66 : i32
    %221 = tpu.assume_multiple %220, 16 : i32
    %222 = arith.truncf %216 : vector<16x32xf32> to vector<16x32xbf16>
    %cst_67 = arith.constant dense<0.000000e+00> : vector<16x96xf32>
    %223 = tpu.matmul %222, %17, %cst_67 {dimension_numbers = #tpu.dot_dimension_numbers<[1], [0], [0], [1], [0, 0, 1, 1], [], []>} : vector<16x32xbf16>, vector<32x96xbf16>, vector<16x96xf32> -> vector<16x96xf32>
    %224 = vector.extract_strided_slice %216 {offsets = [0, 0], sizes = [16, 16], strides = [1, 1]} : vector<16x32xf32> to vector<16x16xf32>
    %225 = vector.extract_strided_slice %216 {offsets = [0, 16], sizes = [16, 16], strides = [1, 1]} : vector<16x32xf32> to vector<16x16xf32>
    %226 = arith.index_cast %218 : i32 to index
    %c0_68 = arith.constant 0 : index
    %227 = vector.load %arg18[%226, %c0_68] : memref<64x48xf32, #tpu.memory_space<vmem>>, vector<16x48xf32>
    %228 = arith.index_cast %221 : i32 to index
    %c0_69 = arith.constant 0 : index
    %229 = vector.load %arg19[%228, %c0_69] : memref<64x48xf32, #tpu.memory_space<vmem>>, vector<16x48xf32>
    %230 = arith.index_cast %218 : i32 to index
    %c0_70 = arith.constant 0 : index
    %231 = vector.load %arg3[%230, %c0_70] : memref<64x1xf32, #tpu.memory_space<vmem>>, vector<16x1xf32>
    %cst_71 = arith.constant 0.000000e+00 : f32
    %232 = vector.broadcast %cst_71 : f32 to vector<16x1xf32>
    %233 = arith.cmpf ogt, %231, %232 : vector<16x1xf32>
    %234 = arith.index_cast %221 : i32 to index
    %c0_72 = arith.constant 0 : index
    %235 = vector.load %arg4[%234, %c0_72] : memref<64x1xf32, #tpu.memory_space<vmem>>, vector<16x1xf32>
    %cst_73 = arith.constant 0.000000e+00 : f32
    %236 = vector.broadcast %cst_73 : f32 to vector<16x1xf32>
    %237 = arith.cmpf ogt, %235, %236 : vector<16x1xf32>
    %238 = vector.extract_strided_slice %223 {offsets = [0, 0], sizes = [16, 48], strides = [1, 1]} : vector<16x96xf32> to vector<16x48xf32>
    %239 = vector.extract_strided_slice %227 {offsets = [0, 0], sizes = [16, 16], strides = [1, 1]} : vector<16x48xf32> to vector<16x16xf32>
    %240 = vector.extract_strided_slice %238 {offsets = [0, 0], sizes = [16, 16], strides = [1, 1]} : vector<16x48xf32> to vector<16x16xf32>
    %241 = arith.addf %239, %240 : vector<16x16xf32>
    %242 = arith.negf %241 : vector<16x16xf32>
    %243 = math.exp %242 : vector<16x16xf32>
    %cst_74 = arith.constant 1.000000e+00 : f32
    %244 = vector.broadcast %cst_74 : f32 to vector<16x16xf32>
    %245 = arith.addf %244, %243 : vector<16x16xf32>
    %246 = arith.divf %244, %245 : vector<16x16xf32>
    %247 = vector.extract_strided_slice %227 {offsets = [0, 16], sizes = [16, 16], strides = [1, 1]} : vector<16x48xf32> to vector<16x16xf32>
    %248 = vector.extract_strided_slice %238 {offsets = [0, 16], sizes = [16, 16], strides = [1, 1]} : vector<16x48xf32> to vector<16x16xf32>
    %249 = arith.addf %247, %248 : vector<16x16xf32>
    %250 = arith.negf %249 : vector<16x16xf32>
    %251 = math.exp %250 : vector<16x16xf32>
    %cst_75 = arith.constant 1.000000e+00 : f32
    %252 = vector.broadcast %cst_75 : f32 to vector<16x16xf32>
    %253 = arith.addf %252, %251 : vector<16x16xf32>
    %254 = arith.divf %252, %253 : vector<16x16xf32>
    %255 = vector.extract_strided_slice %227 {offsets = [0, 32], sizes = [16, 16], strides = [1, 1]} : vector<16x48xf32> to vector<16x16xf32>
    %256 = vector.extract_strided_slice %238 {offsets = [0, 32], sizes = [16, 16], strides = [1, 1]} : vector<16x48xf32> to vector<16x16xf32>
    %257 = vector.broadcast %18 : vector<1x16xf32> to vector<16x16xf32>
    %258 = arith.addf %256, %257 : vector<16x16xf32>
    %259 = arith.mulf %246, %258 : vector<16x16xf32>
    %260 = arith.addf %255, %259 : vector<16x16xf32>
    %261 = math.tanh %260 : vector<16x16xf32>
    %cst_76 = arith.constant 1.000000e+00 : f32
    %262 = vector.broadcast %cst_76 : f32 to vector<16x16xf32>
    %263 = arith.subf %262, %254 : vector<16x16xf32>
    %264 = arith.mulf %263, %261 : vector<16x16xf32>
    %265 = arith.mulf %254, %224 : vector<16x16xf32>
    %266 = arith.addf %264, %265 : vector<16x16xf32>
    %267 = vector.extract_strided_slice %223 {offsets = [0, 48], sizes = [16, 48], strides = [1, 1]} : vector<16x96xf32> to vector<16x48xf32>
    %268 = vector.extract_strided_slice %229 {offsets = [0, 0], sizes = [16, 16], strides = [1, 1]} : vector<16x48xf32> to vector<16x16xf32>
    %269 = vector.extract_strided_slice %267 {offsets = [0, 0], sizes = [16, 16], strides = [1, 1]} : vector<16x48xf32> to vector<16x16xf32>
    %270 = arith.addf %268, %269 : vector<16x16xf32>
    %271 = arith.negf %270 : vector<16x16xf32>
    %272 = math.exp %271 : vector<16x16xf32>
    %cst_77 = arith.constant 1.000000e+00 : f32
    %273 = vector.broadcast %cst_77 : f32 to vector<16x16xf32>
    %274 = arith.addf %273, %272 : vector<16x16xf32>
    %275 = arith.divf %273, %274 : vector<16x16xf32>
    %276 = vector.extract_strided_slice %229 {offsets = [0, 16], sizes = [16, 16], strides = [1, 1]} : vector<16x48xf32> to vector<16x16xf32>
    %277 = vector.extract_strided_slice %267 {offsets = [0, 16], sizes = [16, 16], strides = [1, 1]} : vector<16x48xf32> to vector<16x16xf32>
    %278 = arith.addf %276, %277 : vector<16x16xf32>
    %279 = arith.negf %278 : vector<16x16xf32>
    %280 = math.exp %279 : vector<16x16xf32>
    %cst_78 = arith.constant 1.000000e+00 : f32
    %281 = vector.broadcast %cst_78 : f32 to vector<16x16xf32>
    %282 = arith.addf %281, %280 : vector<16x16xf32>
    %283 = arith.divf %281, %282 : vector<16x16xf32>
    %284 = vector.extract_strided_slice %229 {offsets = [0, 32], sizes = [16, 16], strides = [1, 1]} : vector<16x48xf32> to vector<16x16xf32>
    %285 = vector.extract_strided_slice %267 {offsets = [0, 32], sizes = [16, 16], strides = [1, 1]} : vector<16x48xf32> to vector<16x16xf32>
    %286 = vector.broadcast %19 : vector<1x16xf32> to vector<16x16xf32>
    %287 = arith.addf %285, %286 : vector<16x16xf32>
    %288 = arith.mulf %275, %287 : vector<16x16xf32>
    %289 = arith.addf %284, %288 : vector<16x16xf32>
    %290 = math.tanh %289 : vector<16x16xf32>
    %cst_79 = arith.constant 1.000000e+00 : f32
    %291 = vector.broadcast %cst_79 : f32 to vector<16x16xf32>
    %292 = arith.subf %291, %283 : vector<16x16xf32>
    %293 = arith.mulf %292, %290 : vector<16x16xf32>
    %294 = arith.mulf %283, %225 : vector<16x16xf32>
    %295 = arith.addf %293, %294 : vector<16x16xf32>
    %cst_80 = arith.constant 0.000000e+00 : f32
    %296 = vector.shape_cast %233 : vector<16x1xi1> to vector<16x1xi1>
    %297 = vector.broadcast %296 : vector<16x1xi1> to vector<16x16xi1>
    %298 = vector.broadcast %cst_80 : f32 to vector<16x16xf32>
    %299 = arith.select %297, %266, %298 : vector<16x16xi1>, vector<16x16xf32>
    %300 = arith.index_cast %218 : i32 to index
    %c0_81 = arith.constant 0 : index
    %301 = vector.load %arg14[%300, %c0_81] : memref<64x16xf32, #tpu.memory_space<vmem>>, vector<16x16xf32>
    tpu.vector_store %arg14[%300, %c0_81], %299 {strides = array<i32>} : memref<64x16xf32, #tpu.memory_space<vmem>>, vector<16x16xf32>,
    %cst_82 = arith.constant 0.000000e+00 : f32
    %302 = vector.shape_cast %237 : vector<16x1xi1> to vector<16x1xi1>
    %303 = vector.broadcast %302 : vector<16x1xi1> to vector<16x16xi1>
    %304 = vector.broadcast %cst_82 : f32 to vector<16x16xf32>
    %305 = arith.select %303, %295, %304 : vector<16x16xi1>, vector<16x16xf32>
    %306 = arith.index_cast %221 : i32 to index
    %c0_83 = arith.constant 0 : index
    %307 = vector.load %arg15[%306, %c0_83] : memref<64x16xf32, #tpu.memory_space<vmem>>, vector<16x16xf32>
    tpu.vector_store %arg15[%306, %c0_83], %305 {strides = array<i32>} : memref<64x16xf32, #tpu.memory_space<vmem>>, vector<16x16xf32>,
    %308 = vector.shape_cast %233 : vector<16x1xi1> to vector<16x1xi1>
    %309 = vector.broadcast %308 : vector<16x1xi1> to vector<16x16xi1>
    %310 = arith.select %309, %266, %224 : vector<16x16xi1>, vector<16x16xf32>
    %311 = vector.shape_cast %237 : vector<16x1xi1> to vector<16x1xi1>
    %312 = vector.broadcast %311 : vector<16x1xi1> to vector<16x16xi1>
    %313 = arith.select %312, %295, %225 : vector<16x16xi1>, vector<16x16xf32>
    %314 = tpu.concatenate %310, %313 in 1 : vector<16x16xf32>, vector<16x16xf32> -> vector<16x32xf32>
    %c3_i32_84 = arith.constant 3 : i32
    %c16_i32_85 = arith.constant 16 : i32
    %315 = arith.muli %c3_i32_84, %c16_i32_85 : i32
    %316 = tpu.assume_multiple %315, 16 : i32
    %c3_i32_86 = arith.constant 3 : i32
    %317 = arith.subi %c3_i32_86, %c3_i32_84 : i32
    %c16_i32_87 = arith.constant 16 : i32
    %318 = arith.muli %317, %c16_i32_87 : i32
    %319 = tpu.assume_multiple %318, 16 : i32
    %320 = arith.truncf %314 : vector<16x32xf32> to vector<16x32xbf16>
    %cst_88 = arith.constant dense<0.000000e+00> : vector<16x96xf32>
    %321 = tpu.matmul %320, %17, %cst_88 {dimension_numbers = #tpu.dot_dimension_numbers<[1], [0], [0], [1], [0, 0, 1, 1], [], []>} : vector<16x32xbf16>, vector<32x96xbf16>, vector<16x96xf32> -> vector<16x96xf32>
    %322 = vector.extract_strided_slice %314 {offsets = [0, 0], sizes = [16, 16], strides = [1, 1]} : vector<16x32xf32> to vector<16x16xf32>
    %323 = vector.extract_strided_slice %314 {offsets = [0, 16], sizes = [16, 16], strides = [1, 1]} : vector<16x32xf32> to vector<16x16xf32>
    %324 = arith.index_cast %316 : i32 to index
    %c0_89 = arith.constant 0 : index
    %325 = vector.load %arg18[%324, %c0_89] : memref<64x48xf32, #tpu.memory_space<vmem>>, vector<16x48xf32>
    %326 = arith.index_cast %319 : i32 to index
    %c0_90 = arith.constant 0 : index
    %327 = vector.load %arg19[%326, %c0_90] : memref<64x48xf32, #tpu.memory_space<vmem>>, vector<16x48xf32>
    %328 = arith.index_cast %316 : i32 to index
    %c0_91 = arith.constant 0 : index
    %329 = vector.load %arg3[%328, %c0_91] : memref<64x1xf32, #tpu.memory_space<vmem>>, vector<16x1xf32>
    %cst_92 = arith.constant 0.000000e+00 : f32
    %330 = vector.broadcast %cst_92 : f32 to vector<16x1xf32>
    %331 = arith.cmpf ogt, %329, %330 : vector<16x1xf32>
    %332 = arith.index_cast %319 : i32 to index
    %c0_93 = arith.constant 0 : index
    %333 = vector.load %arg4[%332, %c0_93] : memref<64x1xf32, #tpu.memory_space<vmem>>, vector<16x1xf32>
    %cst_94 = arith.constant 0.000000e+00 : f32
    %334 = vector.broadcast %cst_94 : f32 to vector<16x1xf32>
    %335 = arith.cmpf ogt, %333, %334 : vector<16x1xf32>
    %336 = vector.extract_strided_slice %321 {offsets = [0, 0], sizes = [16, 48], strides = [1, 1]} : vector<16x96xf32> to vector<16x48xf32>
    %337 = vector.extract_strided_slice %325 {offsets = [0, 0], sizes = [16, 16], strides = [1, 1]} : vector<16x48xf32> to vector<16x16xf32>
    %338 = vector.extract_strided_slice %336 {offsets = [0, 0], sizes = [16, 16], strides = [1, 1]} : vector<16x48xf32> to vector<16x16xf32>
    %339 = arith.addf %337, %338 : vector<16x16xf32>
    %340 = arith.negf %339 : vector<16x16xf32>
    %341 = math.exp %340 : vector<16x16xf32>
    %cst_95 = arith.constant 1.000000e+00 : f32
    %342 = vector.broadcast %cst_95 : f32 to vector<16x16xf32>
    %343 = arith.addf %342, %341 : vector<16x16xf32>
    %344 = arith.divf %342, %343 : vector<16x16xf32>
    %345 = vector.extract_strided_slice %325 {offsets = [0, 16], sizes = [16, 16], strides = [1, 1]} : vector<16x48xf32> to vector<16x16xf32>
    %346 = vector.extract_strided_slice %336 {offsets = [0, 16], sizes = [16, 16], strides = [1, 1]} : vector<16x48xf32> to vector<16x16xf32>
    %347 = arith.addf %345, %346 : vector<16x16xf32>
    %348 = arith.negf %347 : vector<16x16xf32>
    %349 = math.exp %348 : vector<16x16xf32>
    %cst_96 = arith.constant 1.000000e+00 : f32
    %350 = vector.broadcast %cst_96 : f32 to vector<16x16xf32>
    %351 = arith.addf %350, %349 : vector<16x16xf32>
    %352 = arith.divf %350, %351 : vector<16x16xf32>
    %353 = vector.extract_strided_slice %325 {offsets = [0, 32], sizes = [16, 16], strides = [1, 1]} : vector<16x48xf32> to vector<16x16xf32>
    %354 = vector.extract_strided_slice %336 {offsets = [0, 32], sizes = [16, 16], strides = [1, 1]} : vector<16x48xf32> to vector<16x16xf32>
    %355 = vector.broadcast %18 : vector<1x16xf32> to vector<16x16xf32>
    %356 = arith.addf %354, %355 : vector<16x16xf32>
    %357 = arith.mulf %344, %356 : vector<16x16xf32>
    %358 = arith.addf %353, %357 : vector<16x16xf32>
    %359 = math.tanh %358 : vector<16x16xf32>
    %cst_97 = arith.constant 1.000000e+00 : f32
    %360 = vector.broadcast %cst_97 : f32 to vector<16x16xf32>
    %361 = arith.subf %360, %352 : vector<16x16xf32>
    %362 = arith.mulf %361, %359 : vector<16x16xf32>
    %363 = arith.mulf %352, %322 : vector<16x16xf32>
    %364 = arith.addf %362, %363 : vector<16x16xf32>
    %365 = vector.extract_strided_slice %321 {offsets = [0, 48], sizes = [16, 48], strides = [1, 1]} : vector<16x96xf32> to vector<16x48xf32>
    %366 = vector.extract_strided_slice %327 {offsets = [0, 0], sizes = [16, 16], strides = [1, 1]} : vector<16x48xf32> to vector<16x16xf32>
    %367 = vector.extract_strided_slice %365 {offsets = [0, 0], sizes = [16, 16], strides = [1, 1]} : vector<16x48xf32> to vector<16x16xf32>
    %368 = arith.addf %366, %367 : vector<16x16xf32>
    %369 = arith.negf %368 : vector<16x16xf32>
    %370 = math.exp %369 : vector<16x16xf32>
    %cst_98 = arith.constant 1.000000e+00 : f32
    %371 = vector.broadcast %cst_98 : f32 to vector<16x16xf32>
    %372 = arith.addf %371, %370 : vector<16x16xf32>
    %373 = arith.divf %371, %372 : vector<16x16xf32>
    %374 = vector.extract_strided_slice %327 {offsets = [0, 16], sizes = [16, 16], strides = [1, 1]} : vector<16x48xf32> to vector<16x16xf32>
    %375 = vector.extract_strided_slice %365 {offsets = [0, 16], sizes = [16, 16], strides = [1, 1]} : vector<16x48xf32> to vector<16x16xf32>
    %376 = arith.addf %374, %375 : vector<16x16xf32>
    %377 = arith.negf %376 : vector<16x16xf32>
    %378 = math.exp %377 : vector<16x16xf32>
    %cst_99 = arith.constant 1.000000e+00 : f32
    %379 = vector.broadcast %cst_99 : f32 to vector<16x16xf32>
    %380 = arith.addf %379, %378 : vector<16x16xf32>
    %381 = arith.divf %379, %380 : vector<16x16xf32>
    %382 = vector.extract_strided_slice %327 {offsets = [0, 32], sizes = [16, 16], strides = [1, 1]} : vector<16x48xf32> to vector<16x16xf32>
    %383 = vector.extract_strided_slice %365 {offsets = [0, 32], sizes = [16, 16], strides = [1, 1]} : vector<16x48xf32> to vector<16x16xf32>
    %384 = vector.broadcast %19 : vector<1x16xf32> to vector<16x16xf32>
    %385 = arith.addf %383, %384 : vector<16x16xf32>
    %386 = arith.mulf %373, %385 : vector<16x16xf32>
    %387 = arith.addf %382, %386 : vector<16x16xf32>
    %388 = math.tanh %387 : vector<16x16xf32>
    %cst_100 = arith.constant 1.000000e+00 : f32
    %389 = vector.broadcast %cst_100 : f32 to vector<16x16xf32>
    %390 = arith.subf %389, %381 : vector<16x16xf32>
    %391 = arith.mulf %390, %388 : vector<16x16xf32>
    %392 = arith.mulf %381, %323 : vector<16x16xf32>
    %393 = arith.addf %391, %392 : vector<16x16xf32>
    %cst_101 = arith.constant 0.000000e+00 : f32
    %394 = vector.shape_cast %331 : vector<16x1xi1> to vector<16x1xi1>
    %395 = vector.broadcast %394 : vector<16x1xi1> to vector<16x16xi1>
    %396 = vector.broadcast %cst_101 : f32 to vector<16x16xf32>
    %397 = arith.select %395, %364, %396 : vector<16x16xi1>, vector<16x16xf32>
    %398 = arith.index_cast %316 : i32 to index
    %c0_102 = arith.constant 0 : index
    %399 = vector.load %arg14[%398, %c0_102] : memref<64x16xf32, #tpu.memory_space<vmem>>, vector<16x16xf32>
    tpu.vector_store %arg14[%398, %c0_102], %397 {strides = array<i32>} : memref<64x16xf32, #tpu.memory_space<vmem>>, vector<16x16xf32>,
    %cst_103 = arith.constant 0.000000e+00 : f32
    %400 = vector.shape_cast %335 : vector<16x1xi1> to vector<16x1xi1>
    %401 = vector.broadcast %400 : vector<16x1xi1> to vector<16x16xi1>
    %402 = vector.broadcast %cst_103 : f32 to vector<16x16xf32>
    %403 = arith.select %401, %393, %402 : vector<16x16xi1>, vector<16x16xf32>
    %404 = arith.index_cast %319 : i32 to index
    %c0_104 = arith.constant 0 : index
    %405 = vector.load %arg15[%404, %c0_104] : memref<64x16xf32, #tpu.memory_space<vmem>>, vector<16x16xf32>
    tpu.vector_store %arg15[%404, %c0_104], %403 {strides = array<i32>} : memref<64x16xf32, #tpu.memory_space<vmem>>, vector<16x16xf32>,
    %406 = vector.shape_cast %331 : vector<16x1xi1> to vector<16x1xi1>
    %407 = vector.broadcast %406 : vector<16x1xi1> to vector<16x16xi1>
    %408 = arith.select %407, %364, %322 : vector<16x16xi1>, vector<16x16xf32>
    %409 = vector.shape_cast %335 : vector<16x1xi1> to vector<16x1xi1>
    %410 = vector.broadcast %409 : vector<16x1xi1> to vector<16x16xi1>
    %411 = arith.select %410, %393, %323 : vector<16x16xi1>, vector<16x16xf32>
    %412 = tpu.concatenate %408, %411 in 1 : vector<16x16xf32>, vector<16x16xf32> -> vector<16x32xf32>
    %c4_i32 = arith.constant 4 : i32
    %c0_105 = arith.constant 0 : index
    %c0_106 = arith.constant 0 : index
    %413 = vector.load %arg17[%c0_105, %c0_106] : memref<16x32xf32, #tpu.memory_space<vmem>>, vector<16x32xf32>
    tpu.vector_store %arg17[%c0_105, %c0_106], %412 {strides = array<i32>} : memref<16x32xf32, #tpu.memory_space<vmem>>, vector<16x32xf32>,
    %c1_i32_107 = arith.constant 1 : i32
    %414 = arith.cmpi eq, %arg0, %c1_i32_107 : i32
    %415 = arith.extui %414 : i1 to i32
    %c0_i32_108 = arith.constant 0 : i32
    %416 = arith.cmpi ne, %415, %c0_i32_108 : i32
    scf.if %416 {
      %417 = arith.truncf %412 : vector<16x32xf32> to vector<16x32xbf16>
      %c0_109 = arith.constant 0 : index
      %c0_110 = arith.constant 0 : index
      %418 = vector.load %arg12[%c0_109, %c0_110] : memref<32x32xbf16, #tpu.memory_space<vmem>>, vector<32x32xbf16>
      %cst_111 = arith.constant dense<0.000000e+00> : vector<16x32xf32>
      %419 = tpu.matmul %417, %418, %cst_111 {dimension_numbers = #tpu.dot_dimension_numbers<[1], [0], [0], [1], [0, 0, 1, 1], [], []>} : vector<16x32xbf16>, vector<32x32xbf16>, vector<16x32xf32> -> vector<16x32xf32>
      %c0_112 = arith.constant 0 : index
      %c0_113 = arith.constant 0 : index
      %420 = vector.load %arg13[%c0_112, %c0_113] : memref<1x32xf32, #tpu.memory_space<vmem>>, vector<1x32xf32>
      %421 = vector.broadcast %420 : vector<1x32xf32> to vector<16x32xf32>
      %422 = arith.addf %419, %421 : vector<16x32xf32>
      %423 = math.tanh %422 : vector<16x32xf32>
      %c0_114 = arith.constant 0 : index
      %c0_115 = arith.constant 0 : index
      %424 = vector.load %arg16[%c0_114, %c0_115] : memref<16x32xf32, #tpu.memory_space<vmem>>, vector<16x32xf32>
      tpu.vector_store %arg16[%c0_114, %c0_115], %423 {strides = array<i32>} : memref<16x32xf32, #tpu.memory_space<vmem>>, vector<16x32xf32>,
    } else {
    }
    return
  }
  func.func @transform_0(%arg0: i32) -> (i32, i32) {
    %c0_i32 = arith.constant 0 : i32
    %c0_i32_0 = arith.constant 0 : i32
    return %arg0, %c0_i32 : i32, i32
  }
  func.func @transform_1(%arg0: i32) -> (i32, i32) {
    %c1_i32 = arith.constant 1 : i32
    %0 = arith.subi %c1_i32, %arg0 : i32
    %c0_i32 = arith.constant 0 : i32
    %c0_i32_0 = arith.constant 0 : i32
    return %0, %c0_i32 : i32, i32
  }
  func.func @transform_2(%arg0: i32) -> (i32, i32) {
    %c0_i32 = arith.constant 0 : i32
    %c0_i32_0 = arith.constant 0 : i32
    return %arg0, %c0_i32 : i32, i32
  }
  func.func @transform_3(%arg0: i32) -> (i32, i32) {
    %c1_i32 = arith.constant 1 : i32
    %0 = arith.subi %c1_i32, %arg0 : i32
    %c0_i32 = arith.constant 0 : i32
    %c0_i32_0 = arith.constant 0 : i32
    return %0, %c0_i32 : i32, i32
  }
  func.func @transform_4(%arg0: i32) -> (i32, i32) {
    %c0_i32 = arith.constant 0 : i32
    %c0_i32_0 = arith.constant 0 : i32
    %c0_i32_1 = arith.constant 0 : i32
    return %c0_i32, %c0_i32_0 : i32, i32
  }
  func.func @transform_5(%arg0: i32) -> (i32, i32) {
    %c0_i32 = arith.constant 0 : i32
    %c0_i32_0 = arith.constant 0 : i32
    %c0_i32_1 = arith.constant 0 : i32
    return %c0_i32, %c0_i32_0 : i32, i32
  }
  func.func @transform_6(%arg0: i32) -> (i32, i32) {
    %c0_i32 = arith.constant 0 : i32
    %c0_i32_0 = arith.constant 0 : i32
    %c0_i32_1 = arith.constant 0 : i32
    return %c0_i32, %c0_i32_0 : i32, i32
  }
  func.func @transform_7(%arg0: i32) -> (i32, i32) {
    %c0_i32 = arith.constant 0 : i32
    %c0_i32_0 = arith.constant 0 : i32
    %c0_i32_1 = arith.constant 0 : i32
    return %c0_i32, %c0_i32_0 : i32, i32
  }
  func.func @transform_8(%arg0: i32) -> (i32, i32) {
    %c0_i32 = arith.constant 0 : i32
    %c0_i32_0 = arith.constant 0 : i32
    %c0_i32_1 = arith.constant 0 : i32
    return %c0_i32, %c0_i32_0 : i32, i32
  }
  func.func @transform_9(%arg0: i32) -> (i32, i32) {
    %c0_i32 = arith.constant 0 : i32
    %c0_i32_0 = arith.constant 0 : i32
    %c0_i32_1 = arith.constant 0 : i32
    return %c0_i32, %c0_i32_0 : i32, i32
  }
  func.func @transform_10(%arg0: i32) -> (i32, i32) {
    %c0_i32 = arith.constant 0 : i32
    %c0_i32_0 = arith.constant 0 : i32
    %c0_i32_1 = arith.constant 0 : i32
    return %c0_i32, %c0_i32_0 : i32, i32
  }
  func.func @transform_11(%arg0: i32) -> (i32, i32) {
    %c0_i32 = arith.constant 0 : i32
    %c0_i32_0 = arith.constant 0 : i32
    %c0_i32_1 = arith.constant 0 : i32
    return %c0_i32, %c0_i32_0 : i32, i32
  }
  func.func @transform_12(%arg0: i32) -> (i32, i32) {
    %c0_i32 = arith.constant 0 : i32
    %c0_i32_0 = arith.constant 0 : i32
    %c0_i32_1 = arith.constant 0 : i32
    return %c0_i32, %c0_i32_0 : i32, i32
  }
  func.func @transform_13(%arg0: i32) -> (i32, i32) {
    %c0_i32 = arith.constant 0 : i32
    %c0_i32_0 = arith.constant 0 : i32
    return %arg0, %c0_i32 : i32, i32
  }
  func.func @transform_14(%arg0: i32) -> (i32, i32) {
    %c1_i32 = arith.constant 1 : i32
    %0 = arith.subi %c1_i32, %arg0 : i32
    %c0_i32 = arith.constant 0 : i32
    %c0_i32_0 = arith.constant 0 : i32
    return %0, %c0_i32 : i32, i32
  }
  func.func @transform_15(%arg0: i32) -> (i32, i32) {
    %c0_i32 = arith.constant 0 : i32
    %c0_i32_0 = arith.constant 0 : i32
    %c0_i32_1 = arith.constant 0 : i32
    return %c0_i32, %c0_i32_0 : i32, i32
  }
}

</mosaic_0001>

<llo_original>
// kernel: seq_encoder.1
$region0: #{seq_encoder.1}
  #allocation0 [shape = 'u32[]', space=smem, size = 0x4, offset = 0x4, fixed_abs, tag = 'smem constant byte address 0x4 - core index']
  #allocation1 [shape = 'u32[144,128]{1,0:T(1,128)}', space=vmem, size = 0x12000, scoped, tag = 'internal scratch']
  #allocation2 [shape = 'f32[16,32]{1,0:T(8,128)}', space=vmem, size = 0x2000, scoped, tag = 'scratch operand']
  #allocation3 [shape = 'f32[64,48]{1,0:T(8,128)}', space=vmem, size = 0x8000, scoped, tag = 'scratch operand']
  #allocation4 [shape = 'f32[64,48]{1,0:T(8,128)}', space=vmem, size = 0x8000, scoped, tag = 'scratch operand']
  %s0 = inlined_call_operand.vmem [shape: bf16[128,8], index: 0, kind: input, shape index: {}, may-alias: {0,1}]
  %s1 = inlined_call_operand.vmem [shape: bf16[128,8], index: 1, kind: input, shape index: {}, may-alias: {0,1}]
  %s2 = inlined_call_operand.vmem [shape: f32[128,1], index: 2, kind: input, shape index: {}, may-alias: {2,3}]
  %s3 = inlined_call_operand.vmem [shape: f32[128,1], index: 3, kind: input, shape index: {}, may-alias: {2,3}]
  %s4 = inlined_call_operand.vmem [shape: bf16[8,48], index: 4, kind: input, shape index: {}]
  %s5 = inlined_call_operand.vmem [shape: bf16[8,48], index: 5, kind: input, shape index: {}]
  %s6 = inlined_call_operand.vmem [shape: f32[1,48], index: 6, kind: input, shape index: {}]
  %s7 = inlined_call_operand.vmem [shape: f32[1,48], index: 7, kind: input, shape index: {}]
  %s8 = inlined_call_operand.vmem [shape: bf16[32,96], index: 8, kind: input, shape index: {}]
  %s9 = inlined_call_operand.vmem [shape: f32[1,16], index: 9, kind: input, shape index: {}]
  %s10 = inlined_call_operand.vmem [shape: f32[1,16], index: 10, kind: input, shape index: {}]
  %s11 = inlined_call_operand.vmem [shape: bf16[32,32], index: 11, kind: input, shape index: {}]
  %s12 = inlined_call_operand.vmem [shape: f32[1,32], index: 12, kind: input, shape index: {}]
  %s13 = inlined_call_operand.vmem [shape: f32[128,16], index: 13, kind: output, shape index: {0}]
  %s14 = inlined_call_operand.vmem [shape: f32[128,16], index: 14, kind: output, shape index: {1}]
  %s15 = inlined_call_operand.vmem [shape: f32[16,32], index: 15, kind: output, shape index: {2}]
  %16 = xla_tuple %s13, %s14, %s15
  %s17 = sld [smem:[#allocation0]]
  $region109: #{seq_encoder.1} parent=0
    _
  %s19 = ssub.s32 1, %s17
  %s20 = scalar_select 0, %s19, %s17
  loop: start=0, step=1, limit=4
  $region2: #{seq_encoder.1} parent=0 // loop_pre_header
    _
  $region3: #{seq_encoder.1} parent=0 // loop_header
    %s22 = sphi 0, %s26
    %p23 = scmp.ge.s32.totalorder %s22, 4
    %s32 = sphi 0, %s34
    %s35 = sphi 0, %s32
    %s36 = sphi 0, %s35
    %s52 = sphi 0, %s36
    %s60 = sphi 0, %s62
    %s63 = sphi 0, %s60
    %s64 = sphi 0, %s63
    %s80 = sphi 0, %s64
    %s86 = sphi 0, %s88
    %s89 = sphi 0, %s86
    %s90 = sphi 0, %s89
    %s106 = sphi 0, %s90
    %s114 = sphi 0, %s116
    %s117 = sphi 0, %s114
    %s118 = sphi 0, %s117
    %s134 = sphi 0, %s118
    %s138 = sphi 0, %s138
    %s140 = sphi 0, %s138
    %s141 = sphi 0, %s140
    %s155 = sphi 0, %s141
    %s159 = sphi 0, %s159
    %s161 = sphi 0, %s159
    %s162 = sphi 0, %s161
    %s176 = sphi 0, %s162
    %s180 = sphi 0, %s180
    %s182 = sphi 0, %s180
    %s183 = sphi 0, %s182
    %s197 = sphi 0, %s183
    %s201 = sphi 0, %s201
    %s203 = sphi 0, %s201
    %s204 = sphi 0, %s203
    %s218 = sphi 0, %s204
    %s222 = sphi 0, %s222
    %s224 = sphi 0, %s222
    %s225 = sphi 0, %s224
    %s239 = sphi 0, %s225
    %s243 = sphi 0, %s243
    %s245 = sphi 0, %s243
    %s246 = sphi 0, %s245
    %s260 = sphi 0, %s246
    %s264 = sphi 0, %s264
    %s266 = sphi 0, %s264
    %s267 = sphi 0, %s266
    %s281 = sphi 0, %s267
    %s285 = sphi 0, %s285
    %s287 = sphi 0, %s285
    %s288 = sphi 0, %s287
    %s302 = sphi 0, %s288
    %s306 = sphi 0, %s306
    %s308 = sphi 0, %s306
    %s309 = sphi 0, %s308
    %s323 = sphi 0, %s309
    %s329 = sphi 0, %s331
    %s332 = sphi 0, %s329
    %s333 = sphi 0, %s332
    %s349 = sphi 0, %s333
    %s357 = sphi 0, %s359
    %s360 = sphi 0, %s357
    %s361 = sphi 0, %s360
    %s377 = sphi 0, %s361
    %s381 = sphi 0, %s381
    %s383 = sphi 0, %s381
    %s384 = sphi 0, %s383
    %s398 = sphi 0, %s384
  $region4: #{seq_encoder.1} parent=0 // loop_header_branch
    %25 = sbr.rel (%p23) target = $region8
  $region5: #{seq_encoder.1} parent=0 // loop_body
    %s27 = ssub.s32 %s22, 1
    %s28 = ssub.s32 %s22, 2
    %s29 = sadd.s32 %s22, 1
    %s30 = ssub.s32 %s22, %s29
    %p31 = scmp.eq.s32.totalorder %s30, 0
    %s33 = sadd.s32 %s32, 1
    %s34 = scalar_select %p31, %s32, %s33
    %p37 = pneg %p31
    %p38 = scmp.eq.s32.totalorder %s22, 1
    %p39 = por %p37, %p38
    %p40 = scmp.ne.s32.totalorder %s32, %s35
    %p41 = scmp.eq.s32.totalorder %s22, 0
    %p42 = por %p40, %p41
    %p43 = scmp.ne.s32.totalorder %s32, %s35
    %p44 = scmp.eq.s32.totalorder %s27, 1
    %p45 = por %p43, %p44
    %p46 = scmp.ne.s32.totalorder %s35, %s36
    %p47 = scmp.eq.s32.totalorder %s27, 0
    %p48 = por %p46, %p47
    %p49 = scmp.ne.s32.totalorder %s35, %s36
    %p50 = scmp.eq.s32.totalorder %s28, 1
    %p51 = por %p49, %p50
    %p53 = scmp.ne.s32.totalorder %s36, %s52
    %p54 = scmp.eq.s32.totalorder %s28, 0
    %p55 = por %p53, %p54
    %s56 = ssub.s32 1, %s22
    %s57 = ssub.s32 1, %s29
    %s58 = ssub.s32 %s56, %s57
    %p59 = scmp.eq.s32.totalorder %s58, 0
    %s61 = sadd.s32 %s60, 1
    %s62 = scalar_select %p59, %s60, %s61
    %p65 = pneg %p59
    %p66 = scmp.eq.s32.totalorder %s22, 1
    %p67 = por %p65, %p66
    %p68 = scmp.ne.s32.totalorder %s60, %s63
    %p69 = scmp.eq.s32.totalorder %s22, 0
    %p70 = por %p68, %p69
    %p71 = scmp.ne.s32.totalorder %s60, %s63
    %p72 = scmp.eq.s32.totalorder %s27, 1
    %p73 = por %p71, %p72
    %p74 = scmp.ne.s32.totalorder %s63, %s64
    %p75 = scmp.eq.s32.totalorder %s27, 0
    %p76 = por %p74, %p75
    %p77 = scmp.ne.s32.totalorder %s63, %s64
    %p78 = scmp.eq.s32.totalorder %s28, 1
    %p79 = por %p77, %p78
    %p81 = scmp.ne.s32.totalorder %s64, %s80
    %p82 = scmp.eq.s32.totalorder %s28, 0
    %p83 = por %p81, %p82
    %s84 = ssub.s32 %s22, %s29
    %p85 = scmp.eq.s32.totalorder %s84, 0
    %s87 = sadd.s32 %s86, 1
    %s88 = scalar_select %p85, %s86, %s87
    %p91 = pneg %p85
    %p92 = scmp.eq.s32.totalorder %s22, 1
    %p93 = por %p91, %p92
    %p94 = scmp.ne.s32.totalorder %s86, %s89
    %p95 = scmp.eq.s32.totalorder %s22, 0
    %p96 = por %p94, %p95
    %p97 = scmp.ne.s32.totalorder %s86, %s89
    %p98 = scmp.eq.s32.totalorder %s27, 1
    %p99 = por %p97, %p98
    %p100 = scmp.ne.s32.totalorder %s89, %s90
    %p101 = scmp.eq.s32.totalorder %s27, 0
    %p102 = por %p100, %p101
    %p103 = scmp.ne.s32.totalorder %s89, %s90
    %p104 = scmp.eq.s32.totalorder %s28, 1
    %p105 = por %p103, %p104
    %p107 = scmp.ne.s32.totalorder %s90, %s106
    %p108 = scmp.eq.s32.totalorder %s28, 0
    %p109 = por %p107, %p108
    %s110 = ssub.s32 1, %s22
    %s111 = ssub.s32 1, %s29
    %s112 = ssub.s32 %s110, %s111
    %p113 = scmp.eq.s32.totalorder %s112, 0
    %s115 = sadd.s32 %s114, 1
    %s116 = scalar_select %p113, %s114, %s115
    %p119 = pneg %p113
    %p120 = scmp.eq.s32.totalorder %s22, 1
    %p121 = por %p119, %p120
    %p122 = scmp.ne.s32.totalorder %s114, %s117
    %p123 = scmp.eq.s32.totalorder %s22, 0
    %p124 = por %p122, %p123
    %p125 = scmp.ne.s32.totalorder %s114, %s117
    %p126 = scmp.eq.s32.totalorder %s27, 1
    %p127 = por %p125, %p126
    %p128 = scmp.ne.s32.totalorder %s117, %s118
    %p129 = scmp.eq.s32.totalorder %s27, 0
    %p130 = por %p128, %p129
    %p131 = scmp.ne.s32.totalorder %s117, %s118
    %p132 = scmp.eq.s32.totalorder %s28, 1
    %p133 = por %p131, %p132
    %p135 = scmp.ne.s32.totalorder %s118, %s134
    %p136 = scmp.eq.s32.totalorder %s28, 0
    %p137 = por %p135, %p136
    %s139 = sadd.s32 %s138, 1
    %p142 = scmp.eq.s32.totalorder %s22, 1
    %p143 = scmp.ne.s32.totalorder %s138, %s140
    %p144 = scmp.eq.s32.totalorder %s22, 0
    %p145 = por %p143, %p144
    %p146 = scmp.ne.s32.totalorder %s138, %s140
    %p147 = scmp.eq.s32.totalorder %s27, 1
    %p148 = por %p146, %p147
    %p149 = scmp.ne.s32.totalorder %s140, %s141
    %p150 = scmp.eq.s32.totalorder %s27, 0
    %p151 = por %p149, %p150
    %p152 = scmp.ne.s32.totalorder %s140, %s141
    %p153 = scmp.eq.s32.totalorder %s28, 1
    %p154 = por %p152, %p153
    %p156 = scmp.ne.s32.totalorder %s141, %s155
    %p157 = scmp.eq.s32.totalorder %s28, 0
    %p158 = por %p156, %p157
    %s160 = sadd.s32 %s159, 1
    %p163 = scmp.eq.s32.totalorder %s22, 1
    %p164 = scmp.ne.s32.totalorder %s159, %s161
    %p165 = scmp.eq.s32.totalorder %s22, 0
    %p166 = por %p164, %p165
    %p167 = scmp.ne.s32.totalorder %s159, %s161
    %p168 = scmp.eq.s32.totalorder %s27, 1
    %p169 = por %p167, %p168
    %p170 = scmp.ne.s32.totalorder %s161, %s162
    %p171 = scmp.eq.s32.totalorder %s27, 0
    %p172 = por %p170, %p171
    %p173 = scmp.ne.s32.totalorder %s161, %s162
    %p174 = scmp.eq.s32.totalorder %s28, 1
    %p175 = por %p173, %p174
    %p177 = scmp.ne.s32.totalorder %s162, %s176
    %p178 = scmp.eq.s32.totalorder %s28, 0
    %p179 = por %p177, %p178
    %s181 = sadd.s32 %s180, 1
    %p184 = scmp.eq.s32.totalorder %s22, 1
    %p185 = scmp.ne.s32.totalorder %s180, %s182
    %p186 = scmp.eq.s32.totalorder %s22, 0
    %p187 = por %p185, %p186
    %p188 = scmp.ne.s32.totalorder %s180, %s182
    %p189 = scmp.eq.s32.totalorder %s27, 1
    %p190 = por %p188, %p189
    %p191 = scmp.ne.s32.totalorder %s182, %s183
    %p192 = scmp.eq.s32.totalorder %s27, 0
    %p193 = por %p191, %p192
    %p194 = scmp.ne.s32.totalorder %s182, %s183
    %p195 = scmp.eq.s32.totalorder %s28, 1
    %p196 = por %p194, %p195
    %p198 = scmp.ne.s32.totalorder %s183, %s197
    %p199 = scmp.eq.s32.totalorder %s28, 0
    %p200 = por %p198, %p199
    %s202 = sadd.s32 %s201, 1
    %p205 = scmp.eq.s32.totalorder %s22, 1
    %p206 = scmp.ne.s32.totalorder %s201, %s203
    %p207 = scmp.eq.s32.totalorder %s22, 0
    %p208 = por %p206, %p207
    %p209 = scmp.ne.s32.totalorder %s201, %s203
    %p210 = scmp.eq.s32.totalorder %s27, 1
    %p211 = por %p209, %p210
    %p212 = scmp.ne.s32.totalorder %s203, %s204
    %p213 = scmp.eq.s32.totalorder %s27, 0
    %p214 = por %p212, %p213
    %p215 = scmp.ne.s32.totalorder %s203, %s204
    %p216 = scmp.eq.s32.totalorder %s28, 1
    %p217 = por %p215, %p216
    %p219 = scmp.ne.s32.totalorder %s204, %s218
    %p220 = scmp.eq.s32.totalorder %s28, 0
    %p221 = por %p219, %p220
    %s223 = sadd.s32 %s222, 1
    %p226 = scmp.eq.s32.totalorder %s22, 1
    %p227 = scmp.ne.s32.totalorder %s222, %s224
    %p228 = scmp.eq.s32.totalorder %s22, 0
    %p229 = por %p227, %p228
    %p230 = scmp.ne.s32.totalorder %s222, %s224
    %p231 = scmp.eq.s32.totalorder %s27, 1
    %p232 = por %p230, %p231
    %p233 = scmp.ne.s32.totalorder %s224, %s225
    %p234 = scmp.eq.s32.totalorder %s27, 0
    %p235 = por %p233, %p234
    %p236 = scmp.ne.s32.totalorder %s224, %s225
    %p237 = scmp.eq.s32.totalorder %s28, 1
    %p238 = por %p236, %p237
    %p240 = scmp.ne.s32.totalorder %s225, %s239
    %p241 = scmp.eq.s32.totalorder %s28, 0
    %p242 = por %p240, %p241
    %s244 = sadd.s32 %s243, 1
    %p247 = scmp.eq.s32.totalorder %s22, 1
    %p248 = scmp.ne.s32.totalorder %s243, %s245
    %p249 = scmp.eq.s32.totalorder %s22, 0
    %p250 = por %p248, %p249
    %p251 = scmp.ne.s32.totalorder %s243, %s245
    %p252 = scmp.eq.s32.totalorder %s27, 1
    %p253 = por %p251, %p252
    %p254 = scmp.ne.s32.totalorder %s245, %s246
    %p255 = scmp.eq.s32.totalorder %s27, 0
    %p256 = por %p254, %p255
    %p257 = scmp.ne.s32.totalorder %s245, %s246
    %p258 = scmp.eq.s32.totalorder %s28, 1
    %p259 = por %p257, %p258
    %p261 = scmp.ne.s32.totalorder %s246, %s260
    %p262 = scmp.eq.s32.totalorder %s28, 0
    %p263 = por %p261, %p262
    %s265 = sadd.s32 %s264, 1
    %p268 = scmp.eq.s32.totalorder %s22, 1
    %p269 = scmp.ne.s32.totalorder %s264, %s266
    %p270 = scmp.eq.s32.totalorder %s22, 0
    %p271 = por %p269, %p270
    %p272 = scmp.ne.s32.totalorder %s264, %s266
    %p273 = scmp.eq.s32.totalorder %s27, 1
    %p274 = por %p272, %p273
    %p275 = scmp.ne.s32.totalorder %s266, %s267
    %p276 = scmp.eq.s32.totalorder %s27, 0
    %p277 = por %p275, %p276
    %p278 = scmp.ne.s32.totalorder %s266, %s267
    %p279 = scmp.eq.s32.totalorder %s28, 1
    %p280 = por %p278, %p279
    %p282 = scmp.ne.s32.totalorder %s267, %s281
    %p283 = scmp.eq.s32.totalorder %s28, 0
    %p284 = por %p282, %p283
    %s286 = sadd.s32 %s285, 1
    %p289 = scmp.eq.s32.totalorder %s22, 1
    %p290 = scmp.ne.s32.totalorder %s285, %s287
    %p291 = scmp.eq.s32.totalorder %s22, 0
    %p292 = por %p290, %p291
    %p293 = scmp.ne.s32.totalorder %s285, %s287
    %p294 = scmp.eq.s32.totalorder %s27, 1
    %p295 = por %p293, %p294
    %p296 = scmp.ne.s32.totalorder %s287, %s288
    %p297 = scmp.eq.s32.totalorder %s27, 0
    %p298 = por %p296, %p297
    %p299 = scmp.ne.s32.totalorder %s287, %s288
    %p300 = scmp.eq.s32.totalorder %s28, 1
    %p301 = por %p299, %p300
    %p303 = scmp.ne.s32.totalorder %s288, %s302
    %p304 = scmp.eq.s32.totalorder %s28, 0
    %p305 = por %p303, %p304
    %s307 = sadd.s32 %s306, 1
    %p310 = scmp.eq.s32.totalorder %s22, 1
    %p311 = scmp.ne.s32.totalorder %s306, %s308
    %p312 = scmp.eq.s32.totalorder %s22, 0
    %p313 = por %p311, %p312
    %p314 = scmp.ne.s32.totalorder %s306, %s308
    %p315 = scmp.eq.s32.totalorder %s27, 1
    %p316 = por %p314, %p315
    %p317 = scmp.ne.s32.totalorder %s308, %s309
    %p318 = scmp.eq.s32.totalorder %s27, 0
    %p319 = por %p317, %p318
    %p320 = scmp.ne.s32.totalorder %s308, %s309
    %p321 = scmp.eq.s32.totalorder %s28, 1
    %p322 = por %p320, %p321
    %p324 = scmp.ne.s32.totalorder %s309, %s323
    %p325 = scmp.eq.s32.totalorder %s28, 0
    %p326 = por %p324, %p325
    %s327 = ssub.s32 %s22, %s29
    %p328 = scmp.eq.s32.totalorder %s327, 0
    %s330 = sadd.s32 %s329, 1
    %s331 = scalar_select %p328, %s329, %s330
    %p334 = pneg %p328
    %p335 = scmp.eq.s32.totalorder %s22, 1
    %p336 = por %p334, %p335
    %p337 = scmp.ne.s32.totalorder %s329, %s332
    %p338 = scmp.eq.s32.totalorder %s22, 0
    %p339 = por %p337, %p338
    %p340 = scmp.ne.s32.totalorder %s329, %s332
    %p341 = scmp.eq.s32.totalorder %s27, 1
    %p342 = por %p340, %p341
    %p343 = scmp.ne.s32.totalorder %s332, %s333
    %p344 = scmp.eq.s32.totalorder %s27, 0
    %p345 = por %p343, %p344
    %p346 = scmp.ne.s32.totalorder %s332, %s333
    %p347 = scmp.eq.s32.totalorder %s28, 1
    %p348 = por %p346, %p347
    %p350 = scmp.ne.s32.totalorder %s333, %s349
    %p351 = scmp.eq.s32.totalorder %s28, 0
    %p352 = por %p350, %p351
    %s353 = ssub.s32 1, %s22
    %s354 = ssub.s32 1, %s29
    %s355 = ssub.s32 %s353, %s354
    %p356 = scmp.eq.s32.totalorder %s355, 0
    %s358 = sadd.s32 %s357, 1
    %s359 = scalar_select %p356, %s357, %s358
    %p362 = pneg %p356
    %p363 = scmp.eq.s32.totalorder %s22, 1
    %p364 = por %p362, %p363
    %p365 = scmp.ne.s32.totalorder %s357, %s360
    %p366 = scmp.eq.s32.totalorder %s22, 0
    %p367 = por %p365, %p366
    %p368 = scmp.ne.s32.totalorder %s357, %s360
    %p369 = scmp.eq.s32.totalorder %s27, 1
    %p370 = por %p368, %p369
    %p371 = scmp.ne.s32.totalorder %s360, %s361
    %p372 = scmp.eq.s32.totalorder %s27, 0
    %p373 = por %p371, %p372
    %p374 = scmp.ne.s32.totalorder %s360, %s361
    %p375 = scmp.eq.s32.totalorder %s28, 1
    %p376 = por %p374, %p375
    %p378 = scmp.ne.s32.totalorder %s361, %s377
    %p379 = scmp.eq.s32.totalorder %s28, 0
    %p380 = por %p378, %p379
    %s382 = sadd.s32 %s381, 1
    %p385 = scmp.eq.s32.totalorder %s22, 1
    %p386 = scmp.ne.s32.totalorder %s381, %s383
    %p387 = scmp.eq.s32.totalorder %s22, 0
    %p388 = por %p386, %p387
    %p389 = scmp.ne.s32.totalorder %s381, %s383
    %p390 = scmp.eq.s32.totalorder %s27, 1
    %p391 = por %p389, %p390
    %p392 = scmp.ne.s32.totalorder %s383, %s384
    %p393 = scmp.eq.s32.totalorder %s27, 0
    %p394 = por %p392, %p393
    %p395 = scmp.ne.s32.totalorder %s383, %s384
    %p396 = scmp.eq.s32.totalorder %s28, 1
    %p397 = por %p395, %p396
    %p399 = scmp.ne.s32.totalorder %s384, %s398
    %p400 = scmp.eq.s32.totalorder %s28, 0
    %p401 = por %p399, %p400
    %p402 = scmp.le.s32.totalorder 1, %s22
    %p403 = scmp.lt.s32.totalorder %s22, 3
    %p404 = pnand %p402, %p403
    %p405 = pneg %p404
    // Predicated region
    $region9: #{seq_encoder.1} parent=5 // pred_check
      _
    $region10: #{seq_encoder.1} parent=5 // pred_check_branch
      %407 = sbr.rel (%p404) target = $region12
    $region11: #{seq_encoder.1} parent=5 // pred_region
      %s408 = ssub.s32 %s22, 1
      // Predicated region
      $region13: #{seq_encoder.1} parent=11 // pred_check
        %p409 = pneg %p151
      $region14: #{seq_encoder.1} parent=11 // pred_check_branch
        %411 = sbr.rel (%p409) target = $region16
      $region15: #{seq_encoder.1} parent=11 // pred_region
        _
      $region16: #{seq_encoder.1} parent=11 // pred_fallthru
        _
      // Predicated region
      $region17: #{seq_encoder.1} parent=11 // pred_check
        %p412 = pneg %p172
      $region18: #{seq_encoder.1} parent=11 // pred_check_branch
        %414 = sbr.rel (%p412) target = $region20
      $region19: #{seq_encoder.1} parent=11 // pred_region
        _
      $region20: #{seq_encoder.1} parent=11 // pred_fallthru
        _
      // Predicated region
      $region21: #{seq_encoder.1} parent=11 // pred_check
        %p415 = pneg %p193
      $region22: #{seq_encoder.1} parent=11 // pred_check_branch
        %417 = sbr.rel (%p415) target = $region24
      $region23: #{seq_encoder.1} parent=11 // pred_region
        _
      $region24: #{seq_encoder.1} parent=11 // pred_fallthru
        _
      // Predicated region
      $region25: #{seq_encoder.1} parent=11 // pred_check
        %p418 = pneg %p214
      $region26: #{seq_encoder.1} parent=11 // pred_check_branch
        %420 = sbr.rel (%p418) target = $region28
      $region27: #{seq_encoder.1} parent=11 // pred_region
        _
      $region28: #{seq_encoder.1} parent=11 // pred_fallthru
        _
      // Predicated region
      $region29: #{seq_encoder.1} parent=11 // pred_check
        %p421 = pneg %p235
      $region30: #{seq_encoder.1} parent=11 // pred_check_branch
        %423 = sbr.rel (%p421) target = $region32
      $region31: #{seq_encoder.1} parent=11 // pred_region
        _
      $region32: #{seq_encoder.1} parent=11 // pred_fallthru
        _
      // Predicated region
      $region33: #{seq_encoder.1} parent=11 // pred_check
        %p424 = pneg %p256
      $region34: #{seq_encoder.1} parent=11 // pred_check_branch
        %426 = sbr.rel (%p424) target = $region36
      $region35: #{seq_encoder.1} parent=11 // pred_region
        _
      $region36: #{seq_encoder.1} parent=11 // pred_fallthru
        _
      // Predicated region
      $region37: #{seq_encoder.1} parent=11 // pred_check
        %p427 = pneg %p277
      $region38: #{seq_encoder.1} parent=11 // pred_check_branch
        %429 = sbr.rel (%p427) target = $region40
      $region39: #{seq_encoder.1} parent=11 // pred_region
        _
      $region40: #{seq_encoder.1} parent=11 // pred_fallthru
        _
      // Predicated region
      $region41: #{seq_encoder.1} parent=11 // pred_check
        %p430 = pneg %p298
      $region42: #{seq_encoder.1} parent=11 // pred_check_branch
        %432 = sbr.rel (%p430) target = $region44
      $region43: #{seq_encoder.1} parent=11 // pred_region
        _
      $region44: #{seq_encoder.1} parent=11 // pred_fallthru
        _
      // Predicated region
      $region45: #{seq_encoder.1} parent=11 // pred_check
        %p433 = pneg %p319
      $region46: #{seq_encoder.1} parent=11 // pred_check_branch
        %435 = sbr.rel (%p433) target = $region48
      $region47: #{seq_encoder.1} parent=11 // pred_region
        _
      $region48: #{seq_encoder.1} parent=11 // pred_fallthru
        _
    $region12: #{seq_encoder.1} parent=5 // pred_fallthru
      _
    %p436 = scmp.lt.s32.totalorder %s22, 2
    // Predicated region
    $region49: #{seq_encoder.1} parent=5 // pred_check
      %p437 = pneg %p436
    $region50: #{seq_encoder.1} parent=5 // pred_check_branch
      %439 = sbr.rel (%p437) target = $region52
    $region51: #{seq_encoder.1} parent=5 // pred_region
      // Predicated region
      $region53: #{seq_encoder.1} parent=51 // pred_check
        %p440 = pneg %p42
      $region54: #{seq_encoder.1} parent=51 // pred_check_branch
        %442 = sbr.rel (%p440) target = $region56
      $region55: #{seq_encoder.1} parent=51 // pred_region
        %s443 = smul.u32 8, %s22
        %p444 = scmp.lt.s32.totalorder %s443, 15
        %s445 = scalar_select %p444, %s443, 15
        %s446 = smul.addr %s445, 4
        %s447 = scalar_lea.vmem %s0, %s446
        %s448 = smul.u32 8, %s22
      $region56: #{seq_encoder.1} parent=51 // pred_fallthru
        _
      // Predicated region
      $region57: #{seq_encoder.1} parent=51 // pred_check
        %p449 = pneg %p70
      $region58: #{seq_encoder.1} parent=51 // pred_check_branch
        %451 = sbr.rel (%p449) target = $region60
      $region59: #{seq_encoder.1} parent=51 // pred_region
        %s452 = ssub.s32 1, %s22
        %s453 = smul.u32 8, %s452
        %p454 = scmp.lt.s32.totalorder %s453, 15
        %s455 = scalar_select %p454, %s453, 15
        %s456 = smul.addr %s455, 4
        %s457 = scalar_lea.vmem %s1, %s456
        %s458 = ssub.s32 1, %s22
        %s459 = smul.u32 8, %s458
      $region60: #{seq_encoder.1} parent=51 // pred_fallthru
        _
      // Predicated region
      $region61: #{seq_encoder.1} parent=51 // pred_check
        %p460 = pneg %p96
      $region62: #{seq_encoder.1} parent=51 // pred_check_branch
        %462 = sbr.rel (%p460) target = $region64
      $region63: #{seq_encoder.1} parent=51 // pred_region
        %s463 = smul.u32 8, %s22
        %p464 = scmp.lt.s32.totalorder %s463, 15
        %s465 = scalar_select %p464, %s463, 15
        %s466 = smul.addr %s465, 8
        %s467 = scalar_lea.vmem %s2, %s466
        %s468 = smul.u32 8, %s22
      $region64: #{seq_encoder.1} parent=51 // pred_fallthru
        _
      // Predicated region
      $region65: #{seq_encoder.1} parent=51 // pred_check
        %p469 = pneg %p124
      $region66: #{seq_encoder.1} parent=51 // pred_check_branch
        %471 = sbr.rel (%p469) target = $region68
      $region67: #{seq_encoder.1} parent=51 // pred_region
        %s472 = ssub.s32 1, %s22
        %s473 = smul.u32 8, %s472
        %p474 = scmp.lt.s32.totalorder %s473, 15
        %s475 = scalar_select %p474, %s473, 15
        %s476 = smul.addr %s475, 8
        %s477 = scalar_lea.vmem %s3, %s476
        %s478 = ssub.s32 1, %s22
        %s479 = smul.u32 8, %s478
      $region68: #{seq_encoder.1} parent=51 // pred_fallthru
        _
    $region52: #{seq_encoder.1} parent=5 // pred_fallthru
      _
    %p480 = scmp.le.s32.totalorder 1, %s22
    %p481 = scmp.lt.s32.totalorder %s22, 3
    %p482 = pnand %p480, %p481
    %p483 = pneg %p482
    // Predicated region
    $region69: #{seq_encoder.1} parent=5 // pred_check
      _
    $region70: #{seq_encoder.1} parent=5 // pred_check_branch
      %485 = sbr.rel (%p482) target = $region72
    $region71: #{seq_encoder.1} parent=5 // pred_region
      %s486 = ssub.s32 %s22, 1
      %s487 = smul.u32 8, %s27
      %p488 = scmp.lt.s32.totalorder %s487, 15
      %s489 = scalar_select %p488, %s487, 15
      %s490 = smul.addr %s489, 4
      %s491 = scalar_lea.vmem %s0, %s490
      %p492 = pneg %p48
      %p493 = pneg %p45
      %s494 = ssub.s32 1, %s27
      %s495 = smul.u32 8, %s494
      %p496 = scmp.lt.s32.totalorder %s495, 15
      %s497 = scalar_select %p496, %s495, 15
      %s498 = smul.addr %s497, 4
      %s499 = scalar_lea.vmem %s1, %s498
      %p500 = pneg %p76
      %p501 = pneg %p73
      %s502 = smul.u32 8, %s27
      %p503 = scmp.lt.s32.totalorder %s502, 15
      %s504 = scalar_select %p503, %s502, 15
      %s505 = smul.addr %s504, 8
      %s506 = scalar_lea.vmem %s2, %s505
      %p507 = pneg %p102
      %p508 = pneg %p99
      %s509 = ssub.s32 1, %s27
      %s510 = smul.u32 8, %s509
      %p511 = scmp.lt.s32.totalorder %s510, 15
      %s512 = scalar_select %p511, %s510, 15
      %s513 = smul.addr %s512, 8
      %s514 = scalar_lea.vmem %s3, %s513
      %p515 = pneg %p130
      %p516 = pneg %p127
      %p517 = pneg %p151
      %p518 = pneg %p148
      %p519 = pneg %p172
      %p520 = pneg %p169
      %p521 = pneg %p193
      %p522 = pneg %p190
      %p523 = pneg %p214
      %p524 = pneg %p211
      %p525 = pneg %p235
      %p526 = pneg %p232
      %p527 = pneg %p256
      %p528 = pneg %p253
      %p529 = pneg %p277
      %p530 = pneg %p274
      %p531 = pneg %p298
      %p532 = pneg %p295
      %p533 = pneg %p319
      %p534 = pneg %p316
      %p535 = pneg %p345
      %p536 = pneg %p342
      %s537 = smul.u32 8, %s27
      %p538 = scmp.lt.s32.totalorder %s537, 15
      %s539 = scalar_select %p538, %s537, 15
      %s540 = smul.addr %s539, 8
      %s541 = scalar_lea.vmem %s13, %s540
      %p542 = pneg %p373
      %p543 = pneg %p370
      %s544 = ssub.s32 1, %s27
      %s545 = smul.u32 8, %s544
      %p546 = scmp.lt.s32.totalorder %s545, 15
      %s547 = scalar_select %p546, %s545, 15
      %s548 = smul.addr %s547, 8
      %s549 = scalar_lea.vmem %s14, %s548
      %p550 = pneg %p394
      %p551 = pneg %p391
      %s552 = smul.u32 8, %s27
      %p553 = scmp.lt.s32.totalorder %s552, 15
      %s554 = scalar_select %p553, %s552, 15
      %s555 = smul.addr %s554, 4
      %s556 = scalar_lea.vmem %s0, %s555
      %s557 = smul.u32 8, %s27
      %s558 = ssub.s32 1, %s27
      %s559 = smul.u32 8, %s558
      %p560 = scmp.lt.s32.totalorder %s559, 15
      %s561 = scalar_select %p560, %s559, 15
      %s562 = smul.addr %s561, 4
      %s563 = scalar_lea.vmem %s1, %s562
      %s564 = ssub.s32 1, %s27
      %s565 = smul.u32 8, %s564
      %s566 = smul.u32 8, %s27
      %p567 = scmp.lt.s32.totalorder %s566, 15
      %s568 = scalar_select %p567, %s566, 15
      %s569 = smul.addr %s568, 8
      %s570 = scalar_lea.vmem %s2, %s569
      %s571 = smul.u32 8, %s27
      %s572 = ssub.s32 1, %s27
      %s573 = smul.u32 8, %s572
      %p574 = scmp.lt.s32.totalorder %s573, 15
      %s575 = scalar_select %p574, %s573, 15
      %s576 = smul.addr %s575, 8
      %s577 = scalar_lea.vmem %s3, %s576
      %s578 = ssub.s32 1, %s27
      %s579 = smul.u32 8, %s578
      %s580 = smul.u32 8, %s27
      %p581 = scmp.lt.s32.totalorder %s580, 15
      %s582 = scalar_select %p581, %s580, 15
      %s583 = smul.addr %s582, 8
      %s584 = scalar_lea.vmem %s13, %s583
      %s585 = smul.u32 8, %s27
      %s586 = ssub.s32 1, %s27
      %s587 = smul.u32 8, %s586
      %p588 = scmp.lt.s32.totalorder %s587, 15
      %s589 = scalar_select %p588, %s587, 15
      %s590 = smul.addr %s589, 8
      %s591 = scalar_lea.vmem %s14, %s590
      %s592 = ssub.s32 1, %s27
      %s593 = smul.u32 8, %s592
      %p595 = scmp.eq.s32.totalorder %s27, 0
      // Predicated region
      $region73: #{seq_encoder.1} parent=71 // pred_check
        %p596 = pneg %p595
      $region74: #{seq_encoder.1} parent=71 // pred_check_branch
        %598 = sbr.rel (%p596) target = $region76
      $region75: #{seq_encoder.1} parent=71 // pred_region
        %vm599 = vcmask 261120
        %600 = vst.msk [vmem:[#allocation2] sm:$0xff] %vm599, 0.0
        %601 = vst.msk [vmem:[#allocation2 + $0x8] sm:$0xff] %vm599, 0.0
      $region76: #{seq_encoder.1} parent=71 // pred_fallthru
        _
      %v602 = vld [vmem:[%s556] sm:$0xf]
      %v603 = vld [vmem:[%s556 + $0x4] sm:$0xf]
      %v604 = vld [vmem:[%s556 + $0x8] sm:$0xf]
      %v605 = vld [vmem:[%s556 + $0xc] sm:$0xf]
      %v606 = vld [vmem:[%s556 + $0x10] sm:$0xf]
      %v607 = vld [vmem:[%s556 + $0x14] sm:$0xf]
      %v608 = vld [vmem:[%s556 + $0x18] sm:$0xf]
      %v609 = vld [vmem:[%s556 + $0x1c] sm:$0xf]
      %v610 = vld [vmem:[%s4] sm:$0xf]
      %v611 = vld [vmem:[%s6] sm:$0x1]
      %v613 = vlaneseq
      %v614 = vshrl.u32 %v613, 7
      %v615 = vsub.s32 0, %v614
      %v616 = vrot.slane %v611, %v615
      %v626 = vunpack.c.l.b16 %v602
      %v627 = vunpack.c.l.b16 %v603
      %v628 = vunpack.c.l.b16 %v604
      %v629 = vunpack.c.l.b16 %v605
      %v630 = vunpack.c.l.b16 %v606
      %v631 = vunpack.c.l.b16 %v607
      %v632 = vunpack.c.l.b16 %v608
      %v633 = vunpack.c.l.b16 %v609
      %v634 = vpack.c.b16 %v627, %v626
      %v635 = vpack.c.b16 %v629, %v628
      %v636 = vpack.c.b16 %v631, %v630
      %v637 = vpack.c.b16 %v633, %v632
      %vm638 = vcmask 64512
      %v640 = vsel %vm638, %v634, 0
      %v643 = vsel %vm638, %v635, 0
      %v646 = vsel %vm638, %v636, 0
      %v649 = vsel %vm638, %v637, 0
      %vm651 = vcmask 1043456
      %v653 = vsel %vm651, %v610, 0
      %655 = vmatprep.subr.bf16.mxu0 0
      %656 = vmatpush1.bf16.msra.mxu0 %v653
      %657 = vmatprep.subr.bf16.mxu0 0
      %658 = vmatpush1.bf16.msra.mxu0 0
      %659 = vmatprep.subr.bf16.mxu0 0
      %660 = vmatpush1.bf16.msra.mxu0 0
      %661 = vmatprep.subr.bf16.mxu0 0
      %662 = vmatpush1.bf16.msra.mxu0 0
      %663 = vmatprep.subr.bf16.mxu0 0
      %664 = vmatpush1.bf16.msra.mxu0 0
      %665 = vmatprep.subr.bf16.mxu0 0
      %666 = vmatpush1.bf16.msra.mxu0 0
      %667 = vmatprep.subr.bf16.mxu0 0
      %668 = vmatpush1.bf16.msra.mxu0 0
      %669 = vmatprep.subr.bf16.mxu0 0
      %670 = vmatpush1.bf16.msra.mxu0 0
      %671 = vmatprep.subr.bf16.mxu0 0
      %672 = vmatpush1.bf16.msra.mxu0 0
      %673 = vmatprep.subr.bf16.mxu0 0
      %674 = vmatpush1.bf16.msra.mxu0 0
      %675 = vmatprep.subr.bf16.mxu0 0
      %676 = vmatpush1.bf16.msra.mxu0 0
      %677 = vmatprep.subr.bf16.mxu0 0
      %678 = vmatpush1.bf16.msra.mxu0 0
      %679 = vmatprep.subr.bf16.mxu0 0
      %680 = vmatpush1.bf16.msra.mxu0 0
      %681 = vmatprep.subr.bf16.mxu0 0
      %682 = vmatpush1.bf16.msra.mxu0 0
      %683 = vmatprep.subr.bf16.mxu0 0
      %684 = vmatpush1.bf16.msra.mxu0 0
      %685 = vmatprep.subr.bf16.mxu0 0
      %686 = vmatpush1.bf16.msra.mxu0 0
      %687 = vmatprep.mubr.bf16.mxu0 0
      %688 = vmatmul.mubr.bf16.gmra.mrb[0].mxu0 %v640
      %v689 = vpop.f32.mrb[0].mxu0
      %v690 = vadd.f32 %v616, %v689
      %v691 = vpop.f32.mrb[0].mxu0
      %v692 = vpop.f32.mrb[0].mxu0
      %v693 = vadd.f32 %v616, %v692
      %v694 = vpop.f32.mrb[0].mxu0
      %695 = vmatprep.mubr.bf16.mxu0 0
      %696 = vmatmul.mubr.bf16.gmra.mrb[0].mxu0 %v643
      %v697 = vpop.f32.mrb[0].mxu0
      %v698 = vadd.f32 %v616, %v697
      %v699 = vpop.f32.mrb[0].mxu0
      %v700 = vpop.f32.mrb[0].mxu0
      %v701 = vadd.f32 %v616, %v700
      %v702 = vpop.f32.mrb[0].mxu0
      %703 = vmatprep.mubr.bf16.mxu0 0
      %704 = vmatmul.mubr.bf16.gmra.mrb[0].mxu0 %v646
      %v705 = vpop.f32.mrb[0].mxu0
      %v706 = vadd.f32 %v616, %v705
      %v707 = vpop.f32.mrb[0].mxu0
      %v708 = vpop.f32.mrb[0].mxu0
      %v709 = vadd.f32 %v616, %v708
      %v710 = vpop.f32.mrb[0].mxu0
      %711 = vmatprep.mubr.bf16.mxu0 0
      %712 = vmatmul.mubr.bf16.gmra.mrb[0].mxu0 %v649
      %v713 = vpop.f32.mrb[0].mxu0
      %v714 = vadd.f32 %v616, %v713
      %v715 = vpop.f32.mrb[0].mxu0
      %v716 = vpop.f32.mrb[0].mxu0
      %v717 = vadd.f32 %v616, %v716
      %v718 = vpop.f32.mrb[0].mxu0
      %719 = vdwg.mxu0
      %vm720 = vcmask 392192
      %721 = vst.msk [vmem:[#allocation3] sm:$0xff] %vm720, %v690
      %722 = vst.msk [vmem:[#allocation3 + $0x8] sm:$0xff] %vm720, %v693
      %723 = vst.msk [vmem:[#allocation3 + $0x10] sm:$0xff] %vm720, %v698
      %724 = vst.msk [vmem:[#allocation3 + $0x18] sm:$0xff] %vm720, %v701
      %725 = vst.msk [vmem:[#allocation3 + $0x20] sm:$0xff] %vm720, %v706
      %726 = vst.msk [vmem:[#allocation3 + $0x28] sm:$0xff] %vm720, %v709
      %727 = vst.msk [vmem:[#allocation3 + $0x30] sm:$0xff] %vm720, %v714
      %728 = vst.msk [vmem:[#allocation3 + $0x38] sm:$0xff] %vm720, %v717
      %v729 = vld [vmem:[%s563] sm:$0xf]
      %v730 = vld [vmem:[%s563 + $0x4] sm:$0xf]
      %v731 = vld [vmem:[%s563 + $0x8] sm:$0xf]
      %v732 = vld [vmem:[%s563 + $0xc] sm:$0xf]
      %v733 = vld [vmem:[%s563 + $0x10] sm:$0xf]
      %v734 = vld [vmem:[%s563 + $0x14] sm:$0xf]
      %v735 = vld [vmem:[%s563 + $0x18] sm:$0xf]
      %v736 = vld [vmem:[%s563 + $0x1c] sm:$0xf]
      %v737 = vld [vmem:[%s5] sm:$0xf]
      %v738 = vld [vmem:[%s7] sm:$0x1]
      %v740 = vlaneseq
      %v741 = vshrl.u32 %v740, 7
      %v742 = vsub.s32 0, %v741
      %v743 = vrot.slane %v738, %v742
      %v753 = vunpack.c.l.b16 %v729
      %v754 = vunpack.c.l.b16 %v730
      %v755 = vunpack.c.l.b16 %v731
      %v756 = vunpack.c.l.b16 %v732
      %v757 = vunpack.c.l.b16 %v733
      %v758 = vunpack.c.l.b16 %v734
      %v759 = vunpack.c.l.b16 %v735
      %v760 = vunpack.c.l.b16 %v736
      %v761 = vpack.c.b16 %v754, %v753
      %v762 = vpack.c.b16 %v756, %v755
      %v763 = vpack.c.b16 %v758, %v757
      %v764 = vpack.c.b16 %v760, %v759
      %v766 = vsel %vm638, %v761, 0
      %v769 = vsel %vm638, %v762, 0
      %v772 = vsel %vm638, %v763, 0
      %v775 = vsel %vm638, %v764, 0
      %v778 = vsel %vm651, %v737, 0
      %780 = vmatprep.subr.bf16.mxu0 0
      %781 = vmatpush1.bf16.msra.mxu0 %v778
      %782 = vmatprep.subr.bf16.mxu0 0
      %783 = vmatpush1.bf16.msra.mxu0 0
      %784 = vmatprep.subr.bf16.mxu0 0
      %785 = vmatpush1.bf16.msra.mxu0 0
      %786 = vmatprep.subr.bf16.mxu0 0
      %787 = vmatpush1.bf16.msra.mxu0 0
      %788 = vmatprep.subr.bf16.mxu0 0
      %789 = vmatpush1.bf16.msra.mxu0 0
      %790 = vmatprep.subr.bf16.mxu0 0
      %791 = vmatpush1.bf16.msra.mxu0 0
      %792 = vmatprep.subr.bf16.mxu0 0
      %793 = vmatpush1.bf16.msra.mxu0 0
      %794 = vmatprep.subr.bf16.mxu0 0
      %795 = vmatpush1.bf16.msra.mxu0 0
      %796 = vmatprep.subr.bf16.mxu0 0
      %797 = vmatpush1.bf16.msra.mxu0 0
      %798 = vmatprep.subr.bf16.mxu0 0
      %799 = vmatpush1.bf16.msra.mxu0 0
      %800 = vmatprep.subr.bf16.mxu0 0
      %801 = vmatpush1.bf16.msra.mxu0 0
      %802 = vmatprep.subr.bf16.mxu0 0
      %803 = vmatpush1.bf16.msra.mxu0 0
      %804 = vmatprep.subr.bf16.mxu0 0
      %805 = vmatpush1.bf16.msra.mxu0 0
      %806 = vmatprep.subr.bf16.mxu0 0
      %807 = vmatpush1.bf16.msra.mxu0 0
      %808 = vmatprep.subr.bf16.mxu0 0
      %809 = vmatpush1.bf16.msra.mxu0 0
      %810 = vmatprep.subr.bf16.mxu0 0
      %811 = vmatpush1.bf16.msra.mxu0 0
      %812 = vmatprep.mubr.bf16.mxu0 0
      %813 = vmatmul.mubr.bf16.gmra.mrb[0].mxu0 %v766
      %v814 = vpop.f32.mrb[0].mxu0
      %v815 = vadd.f32 %v743, %v814
      %v816 = vpop.f32.mrb[0].mxu0
      %v817 = vpop.f32.mrb[0].mxu0
      %v818 = vadd.f32 %v743, %v817
      %v819 = vpop.f32.mrb[0].mxu0
      %820 = vmatprep.mubr.bf16.mxu0 0
      %821 = vmatmul.mubr.bf16.gmra.mrb[0].mxu0 %v769
      %v822 = vpop.f32.mrb[0].mxu0
      %v823 = vadd.f32 %v743, %v822
      %v824 = vpop.f32.mrb[0].mxu0
      %v825 = vpop.f32.mrb[0].mxu0
      %v826 = vadd.f32 %v743, %v825
      %v827 = vpop.f32.mrb[0].mxu0
      %828 = vmatprep.mubr.bf16.mxu0 0
      %829 = vmatmul.mubr.bf16.gmra.mrb[0].mxu0 %v772
      %v830 = vpop.f32.mrb[0].mxu0
      %v831 = vadd.f32 %v743, %v830
      %v832 = vpop.f32.mrb[0].mxu0
      %v833 = vpop.f32.mrb[0].mxu0
      %v834 = vadd.f32 %v743, %v833
      %v835 = vpop.f32.mrb[0].mxu0
      %836 = vmatprep.mubr.bf16.mxu0 0
      %837 = vmatmul.mubr.bf16.gmra.mrb[0].mxu0 %v775
      %v838 = vpop.f32.mrb[0].mxu0
      %v839 = vadd.f32 %v743, %v838
      %v840 = vpop.f32.mrb[0].mxu0
      %v841 = vpop.f32.mrb[0].mxu0
      %v842 = vadd.f32 %v743, %v841
      %v843 = vpop.f32.mrb[0].mxu0
      %844 = vdwg.mxu0
      %845 = vst.msk [vmem:[#allocation4] sm:$0xff] %vm720, %v815
      %846 = vst.msk [vmem:[#allocation4 + $0x8] sm:$0xff] %vm720, %v818
      %847 = vst.msk [vmem:[#allocation4 + $0x10] sm:$0xff] %vm720, %v823
      %848 = vst.msk [vmem:[#allocation4 + $0x18] sm:$0xff] %vm720, %v826
      %849 = vst.msk [vmem:[#allocation4 + $0x20] sm:$0xff] %vm720, %v831
      %850 = vst.msk [vmem:[#allocation4 + $0x28] sm:$0xff] %vm720, %v834
      %851 = vst.msk [vmem:[#allocation4 + $0x30] sm:$0xff] %vm720, %v839
      %852 = vst.msk [vmem:[#allocation4 + $0x38] sm:$0xff] %vm720, %v842
      %v853 = vld [vmem:[%s8] sm:$0xf]
      %v854 = vld [vmem:[%s8 + $0x4] sm:$0xf]
      %v855 = vld [vmem:[%s8 + $0x8] sm:$0xf]
      %v856 = vld [vmem:[%s8 + $0xc] sm:$0xf]
      %v857 = vld [vmem:[%s9] sm:$0x1]
      %v858 = vld [vmem:[%s10] sm:$0x1]
      %v859 = vld [vmem:[#allocation2] sm:$0xff]
      %v860 = vld [vmem:[#allocation2 + $0x8] sm:$0xff]
      %v861 = vpack.c.bf16 %v860, %v859
      %v866 = vunpack.c.l.b16 %v853
      %v867 = vunpack.c.l.b16 %v854
      %v868 = vunpack.c.l.b16 %v855
      %v869 = vunpack.c.l.b16 %v856
      %v870 = vpack.c.b16 %v867, %v866
      %v871 = vpack.c.b16 %v869, %v868
      %vm874 = vcmask 261120
      %v876 = vsel %vm874, %v861, 0
      %878 = vmatprep.subr.bf16.mxu0 0
      %879 = vmatpush1.bf16.msra.mxu0 %v870
      %880 = vmatprep.subr.bf16.mxu0 0
      %881 = vmatpush1.bf16.msra.mxu0 %v871
      %882 = vmatprep.subr.bf16.mxu0 0
      %883 = vmatpush1.bf16.msra.mxu0 0
      %884 = vmatprep.subr.bf16.mxu0 0
      %885 = vmatpush1.bf16.msra.mxu0 0
      %886 = vmatprep.subr.bf16.mxu0 0
      %887 = vmatpush1.bf16.msra.mxu0 0
      %888 = vmatprep.subr.bf16.mxu0 0
      %889 = vmatpush1.bf16.msra.mxu0 0
      %890 = vmatprep.subr.bf16.mxu0 0
      %891 = vmatpush1.bf16.msra.mxu0 0
      %892 = vmatprep.subr.bf16.mxu0 0
      %893 = vmatpush1.bf16.msra.mxu0 0
      %894 = vmatprep.subr.bf16.mxu0 0
      %895 = vmatpush1.bf16.msra.mxu0 0
      %896 = vmatprep.subr.bf16.mxu0 0
      %897 = vmatpush1.bf16.msra.mxu0 0
      %898 = vmatprep.subr.bf16.mxu0 0
      %899 = vmatpush1.bf16.msra.mxu0 0
      %900 = vmatprep.subr.bf16.mxu0 0
      %901 = vmatpush1.bf16.msra.mxu0 0
      %902 = vmatprep.subr.bf16.mxu0 0
      %903 = vmatpush1.bf16.msra.mxu0 0
      %904 = vmatprep.subr.bf16.mxu0 0
      %905 = vmatpush1.bf16.msra.mxu0 0
      %906 = vmatprep.subr.bf16.mxu0 0
      %907 = vmatpush1.bf16.msra.mxu0 0
      %908 = vmatprep.subr.bf16.mxu0 0
      %909 = vmatpush1.bf16.msra.mxu0 0
      %910 = vmatprep.mubr.bf16.mxu0 0
      %911 = vmatmul.mubr.bf16.gmra.mrb[0].mxu0 %v876
      %v912 = vpop.f32.mrb[0].mxu0
      %v913 = vadd.f32 0.0, %v912
      %v914 = vpop.f32.mrb[0].mxu0
      %v915 = vpop.f32.mrb[0].mxu0
      %v916 = vadd.f32 0.0, %v915
      %v917 = vpop.f32.mrb[0].mxu0
      %918 = vdwg.mxu0
      %v919 = vld [vmem:[#allocation3] sm:$0xff]
      %v920 = vld [vmem:[#allocation3 + $0x8] sm:$0xff]
      %s921 = scalar_lea.vmem [#allocation4], 48
      %v922 = vld [vmem:[%s921] sm:$0xff]
      %v923 = vld [vmem:[%s921 + $0x8] sm:$0xff]
      %v924 = vld [vmem:[%s570] sm:$0xff]
      %v925 = vld [vmem:[%s570 + $0x8] sm:$0xff]
      %vm926 = vcmp.gt.f32.partialorder %v924, 0.0
      %vm927 = vcmp.gt.f32.partialorder %v925, 0.0
      %s928 = scalar_lea.vmem %s577, 48
      %v929 = vld [vmem:[%s928] sm:$0xff]
      %v930 = vld [vmem:[%s928 + $0x8] sm:$0xff]
      %vm931 = vcmp.gt.f32.partialorder %v929, 0.0
      %vm932 = vcmp.gt.f32.partialorder %v930, 0.0
      %v933 = vadd.f32 %v919, %v913
      %v934 = vadd.f32 %v920, %v916
      %v935 = vxor.u32 %v933, 2147483648
      %v936 = vxor.u32 %v934, 2147483648
      %v937 = vmul.f32 %v935, 1.442695
      %v938 = vpow.pop %v937
      %v939 = vmul.f32 %v936, 1.442695
      %v940 = vpow.pop %v939
      %v941 = vadd.f32 %v938, 1.0
      %v942 = vadd.f32 %v940, 1.0
      %v943 = vrcp.pop %v941
      %v944 = vmul.f32 1.0, %v943
      %v945 = vrcp.pop %v942
      %v946 = vmul.f32 1.0, %v945
      %v948 = vlaneseq
      %v949 = vshrl.u32 %v948, 7
      %v950 = vsub.s32 0, %v949
      %v951 = vrot.slane %v857, %v950
      %952 = vrot.lane.b32.xlu0 %v951, 32
      %v953 = vpop.permute.xlu0 %952
      %v955 = vadd.f32 %v913, %v953
      %v956 = vadd.f32 %v916, %v953
      %959 = vrot.lane.b32.xlu0 %v955, 96
      %v960 = vpop.permute.xlu0 %959
      %961 = vrot.lane.b32.xlu0 %v956, 96
      %v962 = vpop.permute.xlu0 %961
      %v965 = vmul.f32 %v944, %v960
      %v966 = vmul.f32 %v946, %v962
      %969 = vrot.lane.b32.xlu0 %v965, 32
      %v970 = vpop.permute.xlu0 %969
      %971 = vrot.lane.b32.xlu0 %v966, 32
      %v972 = vpop.permute.xlu0 %971
      %v975 = vadd.f32 %v919, %v970
      %v976 = vadd.f32 %v920, %v972
      %v977 = vtanh.pop %v975
      %v978 = vtanh.pop %v976
      %v979 = vsub.f32 1.0, %v944
      %v980 = vsub.f32 1.0, %v946
      %983 = vrot.lane.b32.xlu0 %v977, 112
      %v984 = vpop.permute.xlu0 %983
      %985 = vrot.lane.b32.xlu0 %v978, 112
      %v986 = vpop.permute.xlu0 %985
      %v989 = vmul.f32 %v979, %v984
      %v990 = vmul.f32 %v980, %v986
      %993 = vrot.lane.b32.xlu0 %v859, 16
      %v994 = vpop.permute.xlu0 %993
      %995 = vrot.lane.b32.xlu0 %v860, 16
      %v996 = vpop.permute.xlu0 %995
      %v999 = vmul.f32 %v944, %v994
      %v1000 = vmul.f32 %v946, %v996
      %v1001 = vadd.f32 %v989, %v999
      %v1002 = vadd.f32 %v990, %v1000
      %1005 = vrot.lane.b32.xlu0 %v913, 80
      %v1006 = vpop.permute.xlu0 %1005
      %1007 = vrot.lane.b32.xlu0 %v916, 80
      %v1008 = vpop.permute.xlu0 %1007
      %v1011 = vadd.f32 %v922, %v1006
      %v1012 = vadd.f32 %v923, %v1008
      %v1013 = vxor.u32 %v1011, 2147483648
      %v1014 = vxor.u32 %v1012, 2147483648
      %v1015 = vmul.f32 %v1013, 1.442695
      %v1016 = vpow.pop %v1015
      %v1017 = vmul.f32 %v1014, 1.442695
      %v1018 = vpow.pop %v1017
      %v1019 = vadd.f32 %v1016, 1.0
      %v1020 = vadd.f32 %v1018, 1.0
      %v1021 = vrcp.pop %v1019
      %v1022 = vmul.f32 1.0, %v1021
      %v1023 = vrcp.pop %v1020
      %v1024 = vmul.f32 1.0, %v1023
      %v1026 = vlaneseq
      %v1027 = vshrl.u32 %v1026, 7
      %v1028 = vsub.s32 0, %v1027
      %v1029 = vrot.slane %v858, %v1028
      %1030 = vrot.lane.b32.xlu0 %v1029, 80
      %v1031 = vpop.permute.xlu0 %1030
      %v1033 = vadd.f32 %v913, %v1031
      %v1034 = vadd.f32 %v916, %v1031
      %1037 = vrot.lane.b32.xlu0 %v1033, 48
      %v1038 = vpop.permute.xlu0 %1037
      %1039 = vrot.lane.b32.xlu0 %v1034, 48
      %v1040 = vpop.permute.xlu0 %1039
      %v1043 = vmul.f32 %v1022, %v1038
      %v1044 = vmul.f32 %v1024, %v1040
      %1047 = vrot.lane.b32.xlu0 %v1043, 32
      %v1048 = vpop.permute.xlu0 %1047
      %1049 = vrot.lane.b32.xlu0 %v1044, 32
      %v1050 = vpop.permute.xlu0 %1049
      %v1053 = vadd.f32 %v922, %v1048
      %v1054 = vadd.f32 %v923, %v1050
      %v1055 = vtanh.pop %v1053
      %v1056 = vtanh.pop %v1054
      %v1057 = vsub.f32 1.0, %v1022
      %v1058 = vsub.f32 1.0, %v1024
      %1061 = vrot.lane.b32.xlu0 %v1055, 112
      %v1062 = vpop.permute.xlu0 %1061
      %1063 = vrot.lane.b32.xlu0 %v1056, 112
      %v1064 = vpop.permute.xlu0 %1063
      %v1067 = vmul.f32 %v1057, %v1062
      %v1068 = vmul.f32 %v1058, %v1064
      %v1069 = vmul.f32 %v1022, %v859
      %v1070 = vmul.f32 %v1024, %v860
      %v1071 = vadd.f32 %v1067, %v1069
      %v1072 = vadd.f32 %v1068, %v1070
      %v1073 = vsel %vm926, 1, 0
      %v1074 = vsel %vm927, 1, 0
      %1075 = vset.pattern.permute.xlu0 0
      %1076 = vperm.xlu0 %1075, %v1073
      %v1077 = vpop.permute.xlu0 %1076
      %1078 = vset.pattern.permute.xlu0 0
      %1079 = vperm.xlu0 %1078, %v1074
      %v1080 = vpop.permute.xlu0 %1079
      %vm1081 = vcmp.eq.s32.totalorder %v1077, 1
      %vm1082 = vcmp.eq.s32.totalorder %v1080, 1
      %v1083 = vsel %vm1081, %v1001, 0.0
      %v1084 = vsel %vm1082, %v1002, 0.0
      %1087 = vrot.lane.b32.xlu0 %v1083, 112
      %v1088 = vpop.permute.xlu0 %1087
      %1089 = vrot.lane.b32.xlu0 %v1084, 112
      %v1090 = vpop.permute.xlu0 %1089
      %vm1093 = vcmask 130048
      %1094 = vst.msk [vmem:[%s584] sm:$0xff] %vm1093, %v1088
      %1095 = vst.msk [vmem:[%s584 + $0x8] sm:$0xff] %vm1093, %v1090
      %v1096 = vsel %vm931, 1, 0
      %v1097 = vsel %vm932, 1, 0
      %1098 = vset.pattern.permute.xlu0 0
      %1099 = vperm.xlu0 %1098, %v1096
      %v1100 = vpop.permute.xlu0 %1099
      %1101 = vset.pattern.permute.xlu0 0
      %1102 = vperm.xlu0 %1101, %v1097
      %v1103 = vpop.permute.xlu0 %1102
      %vm1104 = vcmp.eq.s32.totalorder %v1100, 1
      %vm1105 = vcmp.eq.s32.totalorder %v1103, 1
      %v1106 = vsel %vm1104, %v1071, 0.0
      %v1107 = vsel %vm1105, %v1072, 0.0
      %1110 = vrot.lane.b32.xlu0 %v1106, 112
      %v1111 = vpop.permute.xlu0 %1110
      %1112 = vrot.lane.b32.xlu0 %v1107, 112
      %v1113 = vpop.permute.xlu0 %1112
      %s1116 = scalar_lea.vmem %s591, 48
      %1117 = vst.msk [vmem:[%s1116] sm:$0xff] %vm1093, %v1111
      %1118 = vst.msk [vmem:[%s1116 + $0x8] sm:$0xff] %vm1093, %v1113
      %v1119 = vsel %vm1081, %v1001, %v994
      %v1120 = vsel %vm1082, %v1002, %v996
      %v1121 = vsel %vm1104, %v1071, %v859
      %v1122 = vsel %vm1105, %v1072, %v860
      %1125 = vrot.lane.b32.xlu0 %v1119, 112
      %v1126 = vpop.permute.xlu0 %1125
      %1127 = vrot.lane.b32.xlu0 %v1120, 112
      %v1128 = vpop.permute.xlu0 %1127
      %v1131 = vsel %vm1093, %v1126, %v1121
      %v1132 = vsel %vm1093, %v1128, %v1122
      %v1133 = vpack.c.bf16 %v1132, %v1131
      %v1135 = vsel %vm874, %v1133, 0
      %1137 = vmatprep.subr.bf16.mxu0 0
      %1138 = vmatpush1.bf16.msra.mxu0 %v870
      %1139 = vmatprep.subr.bf16.mxu0 0
      %1140 = vmatpush1.bf16.msra.mxu0 %v871
      %1141 = vmatprep.subr.bf16.mxu0 0
      %1142 = vmatpush1.bf16.msra.mxu0 0
      %1143 = vmatprep.subr.bf16.mxu0 0
      %1144 = vmatpush1.bf16.msra.mxu0 0
      %1145 = vmatprep.subr.bf16.mxu0 0
      %1146 = vmatpush1.bf16.msra.mxu0 0
      %1147 = vmatprep.subr.bf16.mxu0 0
      %1148 = vmatpush1.bf16.msra.mxu0 0
      %1149 = vmatprep.subr.bf16.mxu0 0
      %1150 = vmatpush1.bf16.msra.mxu0 0
      %1151 = vmatprep.subr.bf16.mxu0 0
      %1152 = vmatpush1.bf16.msra.mxu0 0
      %1153 = vmatprep.subr.bf16.mxu0 0
      %1154 = vmatpush1.bf16.msra.mxu0 0
      %1155 = vmatprep.subr.bf16.mxu0 0
      %1156 = vmatpush1.bf16.msra.mxu0 0
      %1157 = vmatprep.subr.bf16.mxu0 0
      %1158 = vmatpush1.bf16.msra.mxu0 0
      %1159 = vmatprep.subr.bf16.mxu0 0
      %1160 = vmatpush1.bf16.msra.mxu0 0
      %1161 = vmatprep.subr.bf16.mxu0 0
      %1162 = vmatpush1.bf16.msra.mxu0 0
      %1163 = vmatprep.subr.bf16.mxu0 0
      %1164 = vmatpush1.bf16.msra.mxu0 0
      %1165 = vmatprep.subr.bf16.mxu0 0
      %1166 = vmatpush1.bf16.msra.mxu0 0
      %1167 = vmatprep.subr.bf16.mxu0 0
      %1168 = vmatpush1.bf16.msra.mxu0 0
      %1169 = vmatprep.mubr.bf16.mxu0 0
      %1170 = vmatmul.mubr.bf16.gmra.mrb[0].mxu0 %v1135
      %v1171 = vpop.f32.mrb[0].mxu0
      %v1172 = vadd.f32 0.0, %v1171
      %v1173 = vpop.f32.mrb[0].mxu0
      %v1174 = vpop.f32.mrb[0].mxu0
      %v1175 = vadd.f32 0.0, %v1174
      %v1176 = vpop.f32.mrb[0].mxu0
      %1177 = vdwg.mxu0
      %s1178 = scalar_lea.vmem [#allocation3], 16
      %v1179 = vld [vmem:[%s1178] sm:$0xff]
      %v1180 = vld [vmem:[%s1178 + $0x8] sm:$0xff]
      %s1181 = scalar_lea.vmem [#allocation4], 32
      %v1182 = vld [vmem:[%s1181] sm:$0xff]
      %v1183 = vld [vmem:[%s1181 + $0x8] sm:$0xff]
      %s1184 = scalar_lea.vmem %s570, 16
      %v1185 = vld [vmem:[%s1184] sm:$0xff]
      %v1186 = vld [vmem:[%s1184 + $0x8] sm:$0xff]
      %vm1187 = vcmp.gt.f32.partialorder %v1185, 0.0
      %vm1188 = vcmp.gt.f32.partialorder %v1186, 0.0
      %s1189 = scalar_lea.vmem %s577, 32
      %v1190 = vld [vmem:[%s1189] sm:$0xff]
      %v1191 = vld [vmem:[%s1189 + $0x8] sm:$0xff]
      %vm1192 = vcmp.gt.f32.partialorder %v1190, 0.0
      %vm1193 = vcmp.gt.f32.partialorder %v1191, 0.0
      %v1194 = vadd.f32 %v1179, %v1172
      %v1195 = vadd.f32 %v1180, %v1175
      %v1196 = vxor.u32 %v1194, 2147483648
      %v1197 = vxor.u32 %v1195, 2147483648
      %v1198 = vmul.f32 %v1196, 1.442695
      %v1199 = vpow.pop %v1198
      %v1200 = vmul.f32 %v1197, 1.442695
      %v1201 = vpow.pop %v1200
      %v1202 = vadd.f32 %v1199, 1.0
      %v1203 = vadd.f32 %v1201, 1.0
      %v1204 = vrcp.pop %v1202
      %v1205 = vmul.f32 1.0, %v1204
      %v1206 = vrcp.pop %v1203
      %v1207 = vmul.f32 1.0, %v1206
      %v1208 = vadd.f32 %v1172, %v953
      %v1209 = vadd.f32 %v1175, %v953
      %1212 = vrot.lane.b32.xlu0 %v1208, 96
      %v1213 = vpop.permute.xlu0 %1212
      %1214 = vrot.lane.b32.xlu0 %v1209, 96
      %v1215 = vpop.permute.xlu0 %1214
      %v1218 = vmul.f32 %v1205, %v1213
      %v1219 = vmul.f32 %v1207, %v1215
      %1222 = vrot.lane.b32.xlu0 %v1218, 32
      %v1223 = vpop.permute.xlu0 %1222
      %1224 = vrot.lane.b32.xlu0 %v1219, 32
      %v1225 = vpop.permute.xlu0 %1224
      %v1228 = vadd.f32 %v1179, %v1223
      %v1229 = vadd.f32 %v1180, %v1225
      %v1230 = vtanh.pop %v1228
      %v1231 = vtanh.pop %v1229
      %v1232 = vsub.f32 1.0, %v1205
      %v1233 = vsub.f32 1.0, %v1207
      %1236 = vrot.lane.b32.xlu0 %v1230, 112
      %v1237 = vpop.permute.xlu0 %1236
      %1238 = vrot.lane.b32.xlu0 %v1231, 112
      %v1239 = vpop.permute.xlu0 %1238
      %v1242 = vmul.f32 %v1232, %v1237
      %v1243 = vmul.f32 %v1233, %v1239
      %1246 = vrot.lane.b32.xlu0 %v1131, 16
      %v1247 = vpop.permute.xlu0 %1246
      %1248 = vrot.lane.b32.xlu0 %v1132, 16
      %v1249 = vpop.permute.xlu0 %1248
      %v1252 = vmul.f32 %v1205, %v1247
      %v1253 = vmul.f32 %v1207, %v1249
      %v1254 = vadd.f32 %v1242, %v1252
      %v1255 = vadd.f32 %v1243, %v1253
      %1258 = vrot.lane.b32.xlu0 %v1172, 80
      %v1259 = vpop.permute.xlu0 %1258
      %1260 = vrot.lane.b32.xlu0 %v1175, 80
      %v1261 = vpop.permute.xlu0 %1260
      %v1264 = vadd.f32 %v1182, %v1259
      %v1265 = vadd.f32 %v1183, %v1261
      %v1266 = vxor.u32 %v1264, 2147483648
      %v1267 = vxor.u32 %v1265, 2147483648
      %v1268 = vmul.f32 %v1266, 1.442695
      %v1269 = vpow.pop %v1268
      %v1270 = vmul.f32 %v1267, 1.442695
      %v1271 = vpow.pop %v1270
      %v1272 = vadd.f32 %v1269, 1.0
      %v1273 = vadd.f32 %v1271, 1.0
      %v1274 = vrcp.pop %v1272
      %v1275 = vmul.f32 1.0, %v1274
      %v1276 = vrcp.pop %v1273
      %v1277 = vmul.f32 1.0, %v1276
      %v1278 = vadd.f32 %v1172, %v1031
      %v1279 = vadd.f32 %v1175, %v1031
      %1282 = vrot.lane.b32.xlu0 %v1278, 48
      %v1283 = vpop.permute.xlu0 %1282
      %1284 = vrot.lane.b32.xlu0 %v1279, 48
      %v1285 = vpop.permute.xlu0 %1284
      %v1288 = vmul.f32 %v1275, %v1283
      %v1289 = vmul.f32 %v1277, %v1285
      %1292 = vrot.lane.b32.xlu0 %v1288, 32
      %v1293 = vpop.permute.xlu0 %1292
      %1294 = vrot.lane.b32.xlu0 %v1289, 32
      %v1295 = vpop.permute.xlu0 %1294
      %v1298 = vadd.f32 %v1182, %v1293
      %v1299 = vadd.f32 %v1183, %v1295
      %v1300 = vtanh.pop %v1298
      %v1301 = vtanh.pop %v1299
      %v1302 = vsub.f32 1.0, %v1275
      %v1303 = vsub.f32 1.0, %v1277
      %1306 = vrot.lane.b32.xlu0 %v1300, 112
      %v1307 = vpop.permute.xlu0 %1306
      %1308 = vrot.lane.b32.xlu0 %v1301, 112
      %v1309 = vpop.permute.xlu0 %1308
      %v1312 = vmul.f32 %v1302, %v1307
      %v1313 = vmul.f32 %v1303, %v1309
      %v1314 = vmul.f32 %v1275, %v1131
      %v1315 = vmul.f32 %v1277, %v1132
      %v1316 = vadd.f32 %v1312, %v1314
      %v1317 = vadd.f32 %v1313, %v1315
      %v1318 = vsel %vm1187, 1, 0
      %v1319 = vsel %vm1188, 1, 0
      %1320 = vset.pattern.permute.xlu0 0
      %1321 = vperm.xlu0 %1320, %v1318
      %v1322 = vpop.permute.xlu0 %1321
      %1323 = vset.pattern.permute.xlu0 0
      %1324 = vperm.xlu0 %1323, %v1319
      %v1325 = vpop.permute.xlu0 %1324
      %vm1326 = vcmp.eq.s32.totalorder %v1322, 1
      %vm1327 = vcmp.eq.s32.totalorder %v1325, 1
      %v1328 = vsel %vm1326, %v1254, 0.0
      %v1329 = vsel %vm1327, %v1255, 0.0
      %1332 = vrot.lane.b32.xlu0 %v1328, 112
      %v1333 = vpop.permute.xlu0 %1332
      %1334 = vrot.lane.b32.xlu0 %v1329, 112
      %v1335 = vpop.permute.xlu0 %1334
      %s1338 = scalar_lea.vmem %s584, 16
      %1339 = vst.msk [vmem:[%s1338] sm:$0xff] %vm1093, %v1333
      %1340 = vst.msk [vmem:[%s1338 + $0x8] sm:$0xff] %vm1093, %v1335
      %v1341 = vsel %vm1192, 1, 0
      %v1342 = vsel %vm1193, 1, 0
      %1343 = vset.pattern.permute.xlu0 0
      %1344 = vperm.xlu0 %1343, %v1341
      %v1345 = vpop.permute.xlu0 %1344
      %1346 = vset.pattern.permute.xlu0 0
      %1347 = vperm.xlu0 %1346, %v1342
      %v1348 = vpop.permute.xlu0 %1347
      %vm1349 = vcmp.eq.s32.totalorder %v1345, 1
      %vm1350 = vcmp.eq.s32.totalorder %v1348, 1
      %v1351 = vsel %vm1349, %v1316, 0.0
      %v1352 = vsel %vm1350, %v1317, 0.0
      %1355 = vrot.lane.b32.xlu0 %v1351, 112
      %v1356 = vpop.permute.xlu0 %1355
      %1357 = vrot.lane.b32.xlu0 %v1352, 112
      %v1358 = vpop.permute.xlu0 %1357
      %s1361 = scalar_lea.vmem %s591, 32
      %1362 = vst.msk [vmem:[%s1361] sm:$0xff] %vm1093, %v1356
      %1363 = vst.msk [vmem:[%s1361 + $0x8] sm:$0xff] %vm1093, %v1358
      %v1364 = vsel %vm1326, %v1254, %v1247
      %v1365 = vsel %vm1327, %v1255, %v1249
      %v1366 = vsel %vm1349, %v1316, %v1131
      %v1367 = vsel %vm1350, %v1317, %v1132
      %1370 = vrot.lane.b32.xlu0 %v1364, 112
      %v1371 = vpop.permute.xlu0 %1370
      %1372 = vrot.lane.b32.xlu0 %v1365, 112
      %v1373 = vpop.permute.xlu0 %1372
      %v1376 = vsel %vm1093, %v1371, %v1366
      %v1377 = vsel %vm1093, %v1373, %v1367
      %v1378 = vpack.c.bf16 %v1377, %v1376
      %v1380 = vsel %vm874, %v1378, 0
      %1382 = vmatprep.subr.bf16.mxu0 0
      %1383 = vmatpush1.bf16.msra.mxu0 %v870
      %1384 = vmatprep.subr.bf16.mxu0 0
      %1385 = vmatpush1.bf16.msra.mxu0 %v871
      %1386 = vmatprep.subr.bf16.mxu0 0
      %1387 = vmatpush1.bf16.msra.mxu0 0
      %1388 = vmatprep.subr.bf16.mxu0 0
      %1389 = vmatpush1.bf16.msra.mxu0 0
      %1390 = vmatprep.subr.bf16.mxu0 0
      %1391 = vmatpush1.bf16.msra.mxu0 0
      %1392 = vmatprep.subr.bf16.mxu0 0
      %1393 = vmatpush1.bf16.msra.mxu0 0
      %1394 = vmatprep.subr.bf16.mxu0 0
      %1395 = vmatpush1.bf16.msra.mxu0 0
      %1396 = vmatprep.subr.bf16.mxu0 0
      %1397 = vmatpush1.bf16.msra.mxu0 0
      %1398 = vmatprep.subr.bf16.mxu0 0
      %1399 = vmatpush1.bf16.msra.mxu0 0
      %1400 = vmatprep.subr.bf16.mxu0 0
      %1401 = vmatpush1.bf16.msra.mxu0 0
      %1402 = vmatprep.subr.bf16.mxu0 0
      %1403 = vmatpush1.bf16.msra.mxu0 0
      %1404 = vmatprep.subr.bf16.mxu0 0
      %1405 = vmatpush1.bf16.msra.mxu0 0
      %1406 = vmatprep.subr.bf16.mxu0 0
      %1407 = vmatpush1.bf16.msra.mxu0 0
      %1408 = vmatprep.subr.bf16.mxu0 0
      %1409 = vmatpush1.bf16.msra.mxu0 0
      %1410 = vmatprep.subr.bf16.mxu0 0
      %1411 = vmatpush1.bf16.msra.mxu0 0
      %1412 = vmatprep.subr.bf16.mxu0 0
      %1413 = vmatpush1.bf16.msra.mxu0 0
      %1414 = vmatprep.mubr.bf16.mxu0 0
      %1415 = vmatmul.mubr.bf16.gmra.mrb[0].mxu0 %v1380
      %v1416 = vpop.f32.mrb[0].mxu0
      %v1417 = vadd.f32 0.0, %v1416
      %v1418 = vpop.f32.mrb[0].mxu0
      %v1419 = vpop.f32.mrb[0].mxu0
      %v1420 = vadd.f32 0.0, %v1419
      %v1421 = vpop.f32.mrb[0].mxu0
      %1422 = vdwg.mxu0
      %s1423 = scalar_lea.vmem [#allocation3], 32
      %v1424 = vld [vmem:[%s1423] sm:$0xff]
      %v1425 = vld [vmem:[%s1423 + $0x8] sm:$0xff]
      %s1426 = scalar_lea.vmem [#allocation4], 16
      %v1427 = vld [vmem:[%s1426] sm:$0xff]
      %v1428 = vld [vmem:[%s1426 + $0x8] sm:$0xff]
      %s1429 = scalar_lea.vmem %s570, 32
      %v1430 = vld [vmem:[%s1429] sm:$0xff]
      %v1431 = vld [vmem:[%s1429 + $0x8] sm:$0xff]
      %vm1432 = vcmp.gt.f32.partialorder %v1430, 0.0
      %vm1433 = vcmp.gt.f32.partialorder %v1431, 0.0
      %s1434 = scalar_lea.vmem %s577, 16
      %v1435 = vld [vmem:[%s1434] sm:$0xff]
      %v1436 = vld [vmem:[%s1434 + $0x8] sm:$0xff]
      %vm1437 = vcmp.gt.f32.partialorder %v1435, 0.0
      %vm1438 = vcmp.gt.f32.partialorder %v1436, 0.0
      %v1439 = vadd.f32 %v1424, %v1417
      %v1440 = vadd.f32 %v1425, %v1420
      %v1441 = vxor.u32 %v1439, 2147483648
      %v1442 = vxor.u32 %v1440, 2147483648
      %v1443 = vmul.f32 %v1441, 1.442695
      %v1444 = vpow.pop %v1443
      %v1445 = vmul.f32 %v1442, 1.442695
      %v1446 = vpow.pop %v1445
      %v1447 = vadd.f32 %v1444, 1.0
      %v1448 = vadd.f32 %v1446, 1.0
      %v1449 = vrcp.pop %v1447
      %v1450 = vmul.f32 1.0, %v1449
      %v1451 = vrcp.pop %v1448
      %v1452 = vmul.f32 1.0, %v1451
      %v1453 = vadd.f32 %v1417, %v953
      %v1454 = vadd.f32 %v1420, %v953
      %1457 = vrot.lane.b32.xlu0 %v1453, 96
      %v1458 = vpop.permute.xlu0 %1457
      %1459 = vrot.lane.b32.xlu0 %v1454, 96
      %v1460 = vpop.permute.xlu0 %1459
      %v1463 = vmul.f32 %v1450, %v1458
      %v1464 = vmul.f32 %v1452, %v1460
      %1467 = vrot.lane.b32.xlu0 %v1463, 32
      %v1468 = vpop.permute.xlu0 %1467
      %1469 = vrot.lane.b32.xlu0 %v1464, 32
      %v1470 = vpop.permute.xlu0 %1469
      %v1473 = vadd.f32 %v1424, %v1468
      %v1474 = vadd.f32 %v1425, %v1470
      %v1475 = vtanh.pop %v1473
      %v1476 = vtanh.pop %v1474
      %v1477 = vsub.f32 1.0, %v1450
      %v1478 = vsub.f32 1.0, %v1452
      %1481 = vrot.lane.b32.xlu0 %v1475, 112
      %v1482 = vpop.permute.xlu0 %1481
      %1483 = vrot.lane.b32.xlu0 %v1476, 112
      %v1484 = vpop.permute.xlu0 %1483
      %v1487 = vmul.f32 %v1477, %v1482
      %v1488 = vmul.f32 %v1478, %v1484
      %1491 = vrot.lane.b32.xlu0 %v1376, 16
      %v1492 = vpop.permute.xlu0 %1491
      %1493 = vrot.lane.b32.xlu0 %v1377, 16
      %v1494 = vpop.permute.xlu0 %1493
      %v1497 = vmul.f32 %v1450, %v1492
      %v1498 = vmul.f32 %v1452, %v1494
      %v1499 = vadd.f32 %v1487, %v1497
      %v1500 = vadd.f32 %v1488, %v1498
      %1503 = vrot.lane.b32.xlu0 %v1417, 80
      %v1504 = vpop.permute.xlu0 %1503
      %1505 = vrot.lane.b32.xlu0 %v1420, 80
      %v1506 = vpop.permute.xlu0 %1505
      %v1509 = vadd.f32 %v1427, %v1504
      %v1510 = vadd.f32 %v1428, %v1506
      %v1511 = vxor.u32 %v1509, 2147483648
      %v1512 = vxor.u32 %v1510, 2147483648
      %v1513 = vmul.f32 %v1511, 1.442695
      %v1514 = vpow.pop %v1513
      %v1515 = vmul.f32 %v1512, 1.442695
      %v1516 = vpow.pop %v1515
      %v1517 = vadd.f32 %v1514, 1.0
      %v1518 = vadd.f32 %v1516, 1.0
      %v1519 = vrcp.pop %v1517
      %v1520 = vmul.f32 1.0, %v1519
      %v1521 = vrcp.pop %v1518
      %v1522 = vmul.f32 1.0, %v1521
      %v1523 = vadd.f32 %v1417, %v1031
      %v1524 = vadd.f32 %v1420, %v1031
      %1527 = vrot.lane.b32.xlu0 %v1523, 48
      %v1528 = vpop.permute.xlu0 %1527
      %1529 = vrot.lane.b32.xlu0 %v1524, 48
      %v1530 = vpop.permute.xlu0 %1529
      %v1533 = vmul.f32 %v1520, %v1528
      %v1534 = vmul.f32 %v1522, %v1530
      %1537 = vrot.lane.b32.xlu0 %v1533, 32
      %v1538 = vpop.permute.xlu0 %1537
      %1539 = vrot.lane.b32.xlu0 %v1534, 32
      %v1540 = vpop.permute.xlu0 %1539
      %v1543 = vadd.f32 %v1427, %v1538
      %v1544 = vadd.f32 %v1428, %v1540
      %v1545 = vtanh.pop %v1543
      %v1546 = vtanh.pop %v1544
      %v1547 = vsub.f32 1.0, %v1520
      %v1548 = vsub.f32 1.0, %v1522
      %1551 = vrot.lane.b32.xlu0 %v1545, 112
      %v1552 = vpop.permute.xlu0 %1551
      %1553 = vrot.lane.b32.xlu0 %v1546, 112
      %v1554 = vpop.permute.xlu0 %1553
      %v1557 = vmul.f32 %v1547, %v1552
      %v1558 = vmul.f32 %v1548, %v1554
      %v1559 = vmul.f32 %v1520, %v1376
      %v1560 = vmul.f32 %v1522, %v1377
      %v1561 = vadd.f32 %v1557, %v1559
      %v1562 = vadd.f32 %v1558, %v1560
      %v1563 = vsel %vm1432, 1, 0
      %v1564 = vsel %vm1433, 1, 0
      %1565 = vset.pattern.permute.xlu0 0
      %1566 = vperm.xlu0 %1565, %v1563
      %v1567 = vpop.permute.xlu0 %1566
      %1568 = vset.pattern.permute.xlu0 0
      %1569 = vperm.xlu0 %1568, %v1564
      %v1570 = vpop.permute.xlu0 %1569
      %vm1571 = vcmp.eq.s32.totalorder %v1567, 1
      %vm1572 = vcmp.eq.s32.totalorder %v1570, 1
      %v1573 = vsel %vm1571, %v1499, 0.0
      %v1574 = vsel %vm1572, %v1500, 0.0
      %1577 = vrot.lane.b32.xlu0 %v1573, 112
      %v1578 = vpop.permute.xlu0 %1577
      %1579 = vrot.lane.b32.xlu0 %v1574, 112
      %v1580 = vpop.permute.xlu0 %1579
      %s1583 = scalar_lea.vmem %s584, 32
      %1584 = vst.msk [vmem:[%s1583] sm:$0xff] %vm1093, %v1578
      %1585 = vst.msk [vmem:[%s1583 + $0x8] sm:$0xff] %vm1093, %v1580
      %v1586 = vsel %vm1437, 1, 0
      %v1587 = vsel %vm1438, 1, 0
      %1588 = vset.pattern.permute.xlu0 0
      %1589 = vperm.xlu0 %1588, %v1586
      %v1590 = vpop.permute.xlu0 %1589
      %1591 = vset.pattern.permute.xlu0 0
      %1592 = vperm.xlu0 %1591, %v1587
      %v1593 = vpop.permute.xlu0 %1592
      %vm1594 = vcmp.eq.s32.totalorder %v1590, 1
      %vm1595 = vcmp.eq.s32.totalorder %v1593, 1
      %v1596 = vsel %vm1594, %v1561, 0.0
      %v1597 = vsel %vm1595, %v1562, 0.0
      %1600 = vrot.lane.b32.xlu0 %v1596, 112
      %v1601 = vpop.permute.xlu0 %1600
      %1602 = vrot.lane.b32.xlu0 %v1597, 112
      %v1603 = vpop.permute.xlu0 %1602
      %s1606 = scalar_lea.vmem %s591, 16
      %1607 = vst.msk [vmem:[%s1606] sm:$0xff] %vm1093, %v1601
      %1608 = vst.msk [vmem:[%s1606 + $0x8] sm:$0xff] %vm1093, %v1603
      %v1609 = vsel %vm1571, %v1499, %v1492
      %v1610 = vsel %vm1572, %v1500, %v1494
      %v1611 = vsel %vm1594, %v1561, %v1376
      %v1612 = vsel %vm1595, %v1562, %v1377
      %1615 = vrot.lane.b32.xlu0 %v1609, 112
      %v1616 = vpop.permute.xlu0 %1615
      %1617 = vrot.lane.b32.xlu0 %v1610, 112
      %v1618 = vpop.permute.xlu0 %1617
      %v1621 = vsel %vm1093, %v1616, %v1611
      %v1622 = vsel %vm1093, %v1618, %v1612
      %v1623 = vpack.c.bf16 %v1622, %v1621
      %v1625 = vsel %vm874, %v1623, 0
      %1627 = vmatprep.subr.bf16.mxu0 0
      %1628 = vmatpush1.bf16.msra.mxu0 %v870
      %1629 = vmatprep.subr.bf16.mxu0 0
      %1630 = vmatpush1.bf16.msra.mxu0 %v871
      %1631 = vmatprep.subr.bf16.mxu0 0
      %1632 = vmatpush1.bf16.msra.mxu0 0
      %1633 = vmatprep.subr.bf16.mxu0 0
      %1634 = vmatpush1.bf16.msra.mxu0 0
      %1635 = vmatprep.subr.bf16.mxu0 0
      %1636 = vmatpush1.bf16.msra.mxu0 0
      %1637 = vmatprep.subr.bf16.mxu0 0
      %1638 = vmatpush1.bf16.msra.mxu0 0
      %1639 = vmatprep.subr.bf16.mxu0 0
      %1640 = vmatpush1.bf16.msra.mxu0 0
      %1641 = vmatprep.subr.bf16.mxu0 0
      %1642 = vmatpush1.bf16.msra.mxu0 0
      %1643 = vmatprep.subr.bf16.mxu0 0
      %1644 = vmatpush1.bf16.msra.mxu0 0
      %1645 = vmatprep.subr.bf16.mxu0 0
      %1646 = vmatpush1.bf16.msra.mxu0 0
      %1647 = vmatprep.subr.bf16.mxu0 0
      %1648 = vmatpush1.bf16.msra.mxu0 0
      %1649 = vmatprep.subr.bf16.mxu0 0
      %1650 = vmatpush1.bf16.msra.mxu0 0
      %1651 = vmatprep.subr.bf16.mxu0 0
      %1652 = vmatpush1.bf16.msra.mxu0 0
      %1653 = vmatprep.subr.bf16.mxu0 0
      %1654 = vmatpush1.bf16.msra.mxu0 0
      %1655 = vmatprep.subr.bf16.mxu0 0
      %1656 = vmatpush1.bf16.msra.mxu0 0
      %1657 = vmatprep.subr.bf16.mxu0 0
      %1658 = vmatpush1.bf16.msra.mxu0 0
      %1659 = vmatprep.mubr.bf16.mxu0 0
      %1660 = vmatmul.mubr.bf16.gmra.mrb[0].mxu0 %v1625
      %v1661 = vpop.f32.mrb[0].mxu0
      %v1662 = vadd.f32 0.0, %v1661
      %v1663 = vpop.f32.mrb[0].mxu0
      %v1664 = vpop.f32.mrb[0].mxu0
      %v1665 = vadd.f32 0.0, %v1664
      %v1666 = vpop.f32.mrb[0].mxu0
      %1667 = vdwg.mxu0
      %s1668 = scalar_lea.vmem [#allocation3], 48
      %v1669 = vld [vmem:[%s1668] sm:$0xff]
      %v1670 = vld [vmem:[%s1668 + $0x8] sm:$0xff]
      %v1671 = vld [vmem:[#allocation4] sm:$0xff]
      %v1672 = vld [vmem:[#allocation4 + $0x8] sm:$0xff]
      %s1673 = scalar_lea.vmem %s570, 48
      %v1674 = vld [vmem:[%s1673] sm:$0xff]
      %v1675 = vld [vmem:[%s1673 + $0x8] sm:$0xff]
      %vm1676 = vcmp.gt.f32.partialorder %v1674, 0.0
      %vm1677 = vcmp.gt.f32.partialorder %v1675, 0.0
      %v1678 = vld [vmem:[%s577] sm:$0xff]
      %v1679 = vld [vmem:[%s577 + $0x8] sm:$0xff]
      %vm1680 = vcmp.gt.f32.partialorder %v1678, 0.0
      %vm1681 = vcmp.gt.f32.partialorder %v1679, 0.0
      %v1682 = vadd.f32 %v1669, %v1662
      %v1683 = vadd.f32 %v1670, %v1665
      %v1684 = vxor.u32 %v1682, 2147483648
      %v1685 = vxor.u32 %v1683, 2147483648
      %v1686 = vmul.f32 %v1684, 1.442695
      %v1687 = vpow.pop %v1686
      %v1688 = vmul.f32 %v1685, 1.442695
      %v1689 = vpow.pop %v1688
      %v1690 = vadd.f32 %v1687, 1.0
      %v1691 = vadd.f32 %v1689, 1.0
      %v1692 = vrcp.pop %v1690
      %v1693 = vmul.f32 1.0, %v1692
      %v1694 = vrcp.pop %v1691
      %v1695 = vmul.f32 1.0, %v1694
      %v1696 = vadd.f32 %v1662, %v953
      %v1697 = vadd.f32 %v1665, %v953
      %1700 = vrot.lane.b32.xlu0 %v1696, 96
      %v1701 = vpop.permute.xlu0 %1700
      %1702 = vrot.lane.b32.xlu0 %v1697, 96
      %v1703 = vpop.permute.xlu0 %1702
      %v1706 = vmul.f32 %v1693, %v1701
      %v1707 = vmul.f32 %v1695, %v1703
      %1710 = vrot.lane.b32.xlu0 %v1706, 32
      %v1711 = vpop.permute.xlu0 %1710
      %1712 = vrot.lane.b32.xlu0 %v1707, 32
      %v1713 = vpop.permute.xlu0 %1712
      %v1716 = vadd.f32 %v1669, %v1711
      %v1717 = vadd.f32 %v1670, %v1713
      %v1718 = vtanh.pop %v1716
      %v1719 = vtanh.pop %v1717
      %v1720 = vsub.f32 1.0, %v1693
      %v1721 = vsub.f32 1.0, %v1695
      %1724 = vrot.lane.b32.xlu0 %v1718, 112
      %v1725 = vpop.permute.xlu0 %1724
      %1726 = vrot.lane.b32.xlu0 %v1719, 112
      %v1727 = vpop.permute.xlu0 %1726
      %v1730 = vmul.f32 %v1720, %v1725
      %v1731 = vmul.f32 %v1721, %v1727
      %1734 = vrot.lane.b32.xlu0 %v1621, 16
      %v1735 = vpop.permute.xlu0 %1734
      %1736 = vrot.lane.b32.xlu0 %v1622, 16
      %v1737 = vpop.permute.xlu0 %1736
      %v1740 = vmul.f32 %v1693, %v1735
      %v1741 = vmul.f32 %v1695, %v1737
      %v1742 = vadd.f32 %v1730, %v1740
      %v1743 = vadd.f32 %v1731, %v1741
      %1746 = vrot.lane.b32.xlu0 %v1662, 80
      %v1747 = vpop.permute.xlu0 %1746
      %1748 = vrot.lane.b32.xlu0 %v1665, 80
      %v1749 = vpop.permute.xlu0 %1748
      %v1752 = vadd.f32 %v1671, %v1747
      %v1753 = vadd.f32 %v1672, %v1749
      %v1754 = vxor.u32 %v1752, 2147483648
      %v1755 = vxor.u32 %v1753, 2147483648
      %v1756 = vmul.f32 %v1754, 1.442695
      %v1757 = vpow.pop %v1756
      %v1758 = vmul.f32 %v1755, 1.442695
      %v1759 = vpow.pop %v1758
      %v1760 = vadd.f32 %v1757, 1.0
      %v1761 = vadd.f32 %v1759, 1.0
      %v1762 = vrcp.pop %v1760
      %v1763 = vmul.f32 1.0, %v1762
      %v1764 = vrcp.pop %v1761
      %v1765 = vmul.f32 1.0, %v1764
      %v1766 = vadd.f32 %v1662, %v1031
      %v1767 = vadd.f32 %v1665, %v1031
      %1770 = vrot.lane.b32.xlu0 %v1766, 48
      %v1771 = vpop.permute.xlu0 %1770
      %1772 = vrot.lane.b32.xlu0 %v1767, 48
      %v1773 = vpop.permute.xlu0 %1772
      %v1776 = vmul.f32 %v1763, %v1771
      %v1777 = vmul.f32 %v1765, %v1773
      %1780 = vrot.lane.b32.xlu0 %v1776, 32
      %v1781 = vpop.permute.xlu0 %1780
      %1782 = vrot.lane.b32.xlu0 %v1777, 32
      %v1783 = vpop.permute.xlu0 %1782
      %v1786 = vadd.f32 %v1671, %v1781
      %v1787 = vadd.f32 %v1672, %v1783
      %v1788 = vtanh.pop %v1786
      %v1789 = vtanh.pop %v1787
      %v1790 = vsub.f32 1.0, %v1763
      %v1791 = vsub.f32 1.0, %v1765
      %1794 = vrot.lane.b32.xlu0 %v1788, 112
      %v1795 = vpop.permute.xlu0 %1794
      %1796 = vrot.lane.b32.xlu0 %v1789, 112
      %v1797 = vpop.permute.xlu0 %1796
      %v1800 = vmul.f32 %v1790, %v1795
      %v1801 = vmul.f32 %v1791, %v1797
      %v1802 = vmul.f32 %v1763, %v1621
      %v1803 = vmul.f32 %v1765, %v1622
      %v1804 = vadd.f32 %v1800, %v1802
      %v1805 = vadd.f32 %v1801, %v1803
      %v1806 = vsel %vm1676, 1, 0
      %v1807 = vsel %vm1677, 1, 0
      %1808 = vset.pattern.permute.xlu0 0
      %1809 = vperm.xlu0 %1808, %v1806
      %v1810 = vpop.permute.xlu0 %1809
      %1811 = vset.pattern.permute.xlu0 0
      %1812 = vperm.xlu0 %1811, %v1807
      %v1813 = vpop.permute.xlu0 %1812
      %vm1814 = vcmp.eq.s32.totalorder %v1810, 1
      %vm1815 = vcmp.eq.s32.totalorder %v1813, 1
      %v1816 = vsel %vm1814, %v1742, 0.0
      %v1817 = vsel %vm1815, %v1743, 0.0
      %1820 = vrot.lane.b32.xlu0 %v1816, 112
      %v1821 = vpop.permute.xlu0 %1820
      %1822 = vrot.lane.b32.xlu0 %v1817, 112
      %v1823 = vpop.permute.xlu0 %1822
      %s1826 = scalar_lea.vmem %s584, 48
      %1827 = vst.msk [vmem:[%s1826] sm:$0xff] %vm1093, %v1821
      %1828 = vst.msk [vmem:[%s1826 + $0x8] sm:$0xff] %vm1093, %v1823
      %v1829 = vsel %vm1680, 1, 0
      %v1830 = vsel %vm1681, 1, 0
      %1831 = vset.pattern.permute.xlu0 0
      %1832 = vperm.xlu0 %1831, %v1829
      %v1833 = vpop.permute.xlu0 %1832
      %1834 = vset.pattern.permute.xlu0 0
      %1835 = vperm.xlu0 %1834, %v1830
      %v1836 = vpop.permute.xlu0 %1835
      %vm1837 = vcmp.eq.s32.totalorder %v1833, 1
      %vm1838 = vcmp.eq.s32.totalorder %v1836, 1
      %v1839 = vsel %vm1837, %v1804, 0.0
      %v1840 = vsel %vm1838, %v1805, 0.0
      %1843 = vrot.lane.b32.xlu0 %v1839, 112
      %v1844 = vpop.permute.xlu0 %1843
      %1845 = vrot.lane.b32.xlu0 %v1840, 112
      %v1846 = vpop.permute.xlu0 %1845
      %1849 = vst.msk [vmem:[%s591] sm:$0xff] %vm1093, %v1844
      %1850 = vst.msk [vmem:[%s591 + $0x8] sm:$0xff] %vm1093, %v1846
      %v1851 = vsel %vm1814, %v1742, %v1735
      %v1852 = vsel %vm1815, %v1743, %v1737
      %v1853 = vsel %vm1837, %v1804, %v1621
      %v1854 = vsel %vm1838, %v1805, %v1622
      %1857 = vrot.lane.b32.xlu0 %v1851, 112
      %v1858 = vpop.permute.xlu0 %1857
      %1859 = vrot.lane.b32.xlu0 %v1852, 112
      %v1860 = vpop.permute.xlu0 %1859
      %v1863 = vsel %vm1093, %v1858, %v1853
      %v1864 = vsel %vm1093, %v1860, %v1854
      %1865 = vst.msk [vmem:[#allocation2] sm:$0xff] %vm874, %v1863
      %1866 = vst.msk [vmem:[#allocation2 + $0x8] sm:$0xff] %vm874, %v1864
      %p1867 = scmp.eq.s32.totalorder %s27, 1
      // Predicated region
      $region77: #{seq_encoder.1} parent=71 // pred_check
        %p1868 = pneg %p1867
      $region78: #{seq_encoder.1} parent=71 // pred_check_branch
        %1870 = sbr.rel (%p1868) target = $region80
      $region79: #{seq_encoder.1} parent=71 // pred_region
        %v1871 = vpack.c.bf16 %v1864, %v1863
        %v1872 = vld [vmem:[%s11] sm:$0xf]
        %v1873 = vld [vmem:[%s11 + $0x4] sm:$0xf]
        %v1874 = vld [vmem:[%s11 + $0x8] sm:$0xf]
        %v1875 = vld [vmem:[%s11 + $0xc] sm:$0xf]
        %v1876 = vld [vmem:[%s12] sm:$0x1]
        %v1878 = vlaneseq
        %v1879 = vshrl.u32 %v1878, 7
        %v1880 = vsub.s32 0, %v1879
        %v1881 = vrot.slane %v1876, %v1880
        %v1887 = vunpack.c.l.b16 %v1872
        %v1888 = vunpack.c.l.b16 %v1873
        %v1889 = vunpack.c.l.b16 %v1874
        %v1890 = vunpack.c.l.b16 %v1875
        %v1891 = vpack.c.b16 %v1888, %v1887
        %v1892 = vpack.c.b16 %v1890, %v1889
        %v1896 = vsel %vm874, %v1871, 0
        %1898 = vmatprep.subr.bf16.mxu0 0
        %1899 = vmatpush1.bf16.msra.mxu0 %v1891
        %1900 = vmatprep.subr.bf16.mxu0 0
        %1901 = vmatpush1.bf16.msra.mxu0 %v1892
        %1902 = vmatprep.subr.bf16.mxu0 0
        %1903 = vmatpush1.bf16.msra.mxu0 0
        %1904 = vmatprep.subr.bf16.mxu0 0
        %1905 = vmatpush1.bf16.msra.mxu0 0
        %1906 = vmatprep.subr.bf16.mxu0 0
        %1907 = vmatpush1.bf16.msra.mxu0 0
        %1908 = vmatprep.subr.bf16.mxu0 0
        %1909 = vmatpush1.bf16.msra.mxu0 0
        %1910 = vmatprep.subr.bf16.mxu0 0
        %1911 = vmatpush1.bf16.msra.mxu0 0
        %1912 = vmatprep.subr.bf16.mxu0 0
        %1913 = vmatpush1.bf16.msra.mxu0 0
        %1914 = vmatprep.subr.bf16.mxu0 0
        %1915 = vmatpush1.bf16.msra.mxu0 0
        %1916 = vmatprep.subr.bf16.mxu0 0
        %1917 = vmatpush1.bf16.msra.mxu0 0
        %1918 = vmatprep.subr.bf16.mxu0 0
        %1919 = vmatpush1.bf16.msra.mxu0 0
        %1920 = vmatprep.subr.bf16.mxu0 0
        %1921 = vmatpush1.bf16.msra.mxu0 0
        %1922 = vmatprep.subr.bf16.mxu0 0
        %1923 = vmatpush1.bf16.msra.mxu0 0
        %1924 = vmatprep.subr.bf16.mxu0 0
        %1925 = vmatpush1.bf16.msra.mxu0 0
        %1926 = vmatprep.subr.bf16.mxu0 0
        %1927 = vmatpush1.bf16.msra.mxu0 0
        %1928 = vmatprep.subr.bf16.mxu0 0
        %1929 = vmatpush1.bf16.msra.mxu0 0
        %1930 = vmatprep.mubr.bf16.mxu0 0
        %1931 = vmatmul.mubr.bf16.gmra.mrb[0].mxu0 %v1896
        %v1932 = vpop.f32.mrb[0].mxu0
        %v1933 = vadd.f32 %v1881, %v1932
        %v1934 = vpop.f32.mrb[0].mxu0
        %v1935 = vpop.f32.mrb[0].mxu0
        %v1936 = vadd.f32 %v1881, %v1935
        %v1937 = vpop.f32.mrb[0].mxu0
        %1938 = vdwg.mxu0
        %v1939 = vtanh.pop %v1933
        %v1940 = vtanh.pop %v1936
        %1941 = vst.msk [vmem:[%s15] sm:$0xff] %vm874, %v1939
        %1942 = vst.msk [vmem:[%s15 + $0x8] sm:$0xff] %vm874, %v1940
      $region80: #{seq_encoder.1} parent=71 // pred_fallthru
        _
      %s1943 = smul.u32 8, %s27
      %p1944 = scmp.lt.s32.totalorder %s1943, 15
      %s1945 = scalar_select %p1944, %s1943, 15
      %s1946 = smul.addr %s1945, 8
      %s1947 = scalar_lea.vmem %s13, %s1946
      %s1948 = ssub.s32 1, %s27
      %s1949 = smul.u32 8, %s1948
      %p1950 = scmp.lt.s32.totalorder %s1949, 15
      %s1951 = scalar_select %p1950, %s1949, 15
      %s1952 = smul.addr %s1951, 8
      %s1953 = scalar_lea.vmem %s14, %s1952
      // Predicated region
      $region81: #{seq_encoder.1} parent=71 // pred_check
        %p1954 = pneg %p342
      $region82: #{seq_encoder.1} parent=71 // pred_check_branch
        %1956 = sbr.rel (%p1954) target = $region84
      $region83: #{seq_encoder.1} parent=71 // pred_region
        %s1957 = smul.u32 8, %s27
      $region84: #{seq_encoder.1} parent=71 // pred_fallthru
        _
      // Predicated region
      $region85: #{seq_encoder.1} parent=71 // pred_check
        %p1958 = pneg %p370
      $region86: #{seq_encoder.1} parent=71 // pred_check_branch
        %1960 = sbr.rel (%p1958) target = $region88
      $region87: #{seq_encoder.1} parent=71 // pred_region
        %s1961 = ssub.s32 1, %s27
        %s1962 = smul.u32 8, %s1961
      $region88: #{seq_encoder.1} parent=71 // pred_fallthru
        _
      // Predicated region
      $region89: #{seq_encoder.1} parent=71 // pred_check
        %p1963 = pneg %p391
      $region90: #{seq_encoder.1} parent=71 // pred_check_branch
        %1965 = sbr.rel (%p1963) target = $region92
      $region91: #{seq_encoder.1} parent=71 // pred_region
        _
      $region92: #{seq_encoder.1} parent=71 // pred_fallthru
        _
      // Predicated region
      $region93: #{seq_encoder.1} parent=71 // pred_check
        %p1966 = pneg %p391
      $region94: #{seq_encoder.1} parent=71 // pred_check_branch
        %1968 = sbr.rel (%p1966) target = $region96
      $region95: #{seq_encoder.1} parent=71 // pred_region
        _
      $region96: #{seq_encoder.1} parent=71 // pred_fallthru
        _
    $region72: #{seq_encoder.1} parent=5 // pred_fallthru
      _
    %p1969 = scmp.le.s32.totalorder 2, %s22
    // Predicated region
    $region97: #{seq_encoder.1} parent=5 // pred_check
      %p1970 = pneg %p1969
    $region98: #{seq_encoder.1} parent=5 // pred_check_branch
      %1972 = sbr.rel (%p1970) target = $region100
    $region99: #{seq_encoder.1} parent=5 // pred_region
      %s1973 = ssub.s32 %s22, 2
      // Predicated region
      $region101: #{seq_encoder.1} parent=99 // pred_check
        %p1974 = pneg %p348
      $region102: #{seq_encoder.1} parent=99 // pred_check_branch
        %1976 = sbr.rel (%p1974) target = $region104
      $region103: #{seq_encoder.1} parent=99 // pred_region
        %s1977 = smul.u32 8, %s28
        %p1978 = scmp.lt.s32.totalorder %s1977, 15
        %s1979 = scalar_select %p1978, %s1977, 15
        %s1980 = smul.addr %s1979, 8
        %s1981 = scalar_lea.vmem %s13, %s1980
      $region104: #{seq_encoder.1} parent=99 // pred_fallthru
        _
      // Predicated region
      $region105: #{seq_encoder.1} parent=99 // pred_check
        %p1982 = pneg %p376
      $region106: #{seq_encoder.1} parent=99 // pred_check_branch
        %1984 = sbr.rel (%p1982) target = $region108
      $region107: #{seq_encoder.1} parent=99 // pred_region
        %s1985 = ssub.s32 1, %s28
        %s1986 = smul.u32 8, %s1985
        %p1987 = scmp.lt.s32.totalorder %s1986, 15
        %s1988 = scalar_select %p1987, %s1986, 15
        %s1989 = smul.addr %s1988, 8
        %s1990 = scalar_lea.vmem %s14, %s1989
      $region108: #{seq_encoder.1} parent=99 // pred_fallthru
        _
    $region100: #{seq_encoder.1} parent=5 // pred_fallthru
      _
  $region6: #{seq_encoder.1} parent=0 // loop_footer
    %s26 = sadd.s32 1, %s22
  $region7: #{seq_encoder.1} parent=0 // loop_footer_branch
    %21 = sbr.rel target = $region3
  $region8: #{seq_encoder.1} parent=0 // loop_exit
    _

</llo_original>
